<compile_context>
chip_gen: v7x
topology: tpu7x:2x2x1
jax: 0.10.0
libtpu: 0.0.40
codegen_flags: <defaults>
</compile_context>

<pallas_src>
import functools

import numpy as np
import jax
import jax.numpy as jnp
from jax.experimental import pallas as pl
from jax.experimental.pallas import tpu as pltpu

_LANE = 128
_ROW = 16            # bf16 packs 16 rows per vreg -> pad bf16 row dims to 16


def _round_up(x, m):
    return ((x + m - 1) // m) * m


def _vmem_budget_bytes():
    cap = 64 * 1024 * 1024          # conservative default = v7x per-core VMEM
    try:
        cap = int(getattr(pltpu.get_tpu_info(), "vmem_capacity_bytes", cap))
    except Exception:
        pass
    return int(cap * 0.8)           # leave ~20% headroom for compiler scratch


# --------------------------------------------------------------------------
# Resident-W kernels (backbone weight fits VMEM; DMA'd from HBM exactly once).
# --------------------------------------------------------------------------
def _proto_resident_kernel(sup_ref, w_ref, b_ref, pw_ref, zpt_ref, pn_ref):
    """
    grid = (1,)
    sup_ref : (Ns_pad, K_pad)   bf16   support pixels
    w_ref   : (K_pad, D_pad)    bf16   backbone weight (resident)
    b_ref   : (1, D_pad)        f32    bias
    pw_ref  : (NW_pad, Ns_pad)  f32    class-mean weights (one-hot / count)
    zpt_ref : (D_pad, NW_pad)   f32    prototypes, TRANSPOSED (output)
    pn_ref  : (1, NW_pad)       f32    ||prototype||^2 (output, fused here)
    """
    z_sup = jnp.maximum(
        jnp.dot(sup_ref[...], w_ref[...], preferred_element_type=jnp.float32)
        + b_ref[...], 0.0)                                    # (Ns_pad, D_pad)
    z_proto = jnp.dot(pw_ref[...], z_sup,
                      preferred_element_type=jnp.float32)     # (NW_pad, D_pad)
    zpt = z_proto.T                                           # one-time XLU transpose
    zpt_ref[...] = zpt
    pn_ref[...] = jnp.sum(zpt * zpt, axis=0, keepdims=True)


def _score_resident_kernel(qry_ref, w_ref, b_ref, zpt_ref, pn_ref, out_ref):
    """
    grid = (n_q,)   ("parallel")
    qry_ref : (TQ, K_pad)       bf16   query pixels, this row tile
    w_ref   : (K_pad, D_pad)    bf16   backbone weight (resident, fetched once)
    zpt_ref : (D_pad, NW_pad)   f32    transposed prototypes (resident)
    pn_ref  : (1, NW_pad)       f32    ||prototype||^2 (resident)
    out_ref : (TQ, NW_pad)      f32    scores = -euclidean distance
    """
    z_q = jnp.maximum(
        jnp.dot(qry_ref[...], w_ref[...], preferred_element_type=jnp.float32)
        + b_ref[...], 0.0)                                    # (TQ, D_pad)
    q_norm = jnp.sum(z_q * z_q, axis=-1, keepdims=True)       # (TQ, 1)
    qp = jnp.dot(z_q, zpt_ref[...],
                 preferred_element_type=jnp.float32)          # (TQ, NW_pad) MXU
    d2 = jnp.maximum(q_norm + pn_ref[...] - 2.0 * qp, 0.0)    # clamp: fp cancellation
    out_ref[...] = -jnp.sqrt(d2)


# --------------------------------------------------------------------------
# K-tiled fallback kernels (weight too large to keep resident in VMEM).
# --------------------------------------------------------------------------
def _proto_tiled_kernel(sup_ref, w_ref, b_ref, pw_ref, zpt_ref, pn_ref, acc_ref):
    """grid = (n_k,) ("arbitrary"); acc_ref: (Ns_pad, D_pad) f32 scratch."""
    k = pl.program_id(0)

    @pl.when(k == 0)
    def _():
        acc_ref[...] = jnp.zeros_like(acc_ref)

    acc_ref[...] += jnp.dot(sup_ref[...], w_ref[...],
                            preferred_element_type=jnp.float32)

    @pl.when(k == pl.num_programs(0) - 1)
    def _():
        z_sup = jnp.maximum(acc_ref[...] + b_ref[...], 0.0)
        z_proto = jnp.dot(pw_ref[...], z_sup,
                          preferred_element_type=jnp.float32)
        zpt = z_proto.T
        zpt_ref[...] = zpt
        pn_ref[...] = jnp.sum(zpt * zpt, axis=0, keepdims=True)


def _score_tiled_kernel(qry_ref, w_ref, b_ref, zpt_ref, pn_ref, out_ref, acc_ref):
    """grid = (n_q, n_k) ("parallel", "arbitrary"); acc_ref: (TQ, D_pad) f32."""
    k = pl.program_id(1)

    @pl.when(k == 0)
    def _():
        acc_ref[...] = jnp.zeros_like(acc_ref)

    acc_ref[...] += jnp.dot(qry_ref[...], w_ref[...],
                            preferred_element_type=jnp.float32)

    @pl.when(k == pl.num_programs(1) - 1)
    def _():
        z_q = jnp.maximum(acc_ref[...] + b_ref[...], 0.0)
        q_norm = jnp.sum(z_q * z_q, axis=-1, keepdims=True)
        qp = jnp.dot(z_q, zpt_ref[...], preferred_element_type=jnp.float32)
        d2 = jnp.maximum(q_norm + pn_ref[...] - 2.0 * qp, 0.0)
        out_ref[...] = -jnp.sqrt(d2)


# --------------------------------------------------------------------------
# Jitted implementation (pad/cast fuses; all tile math is static).
# --------------------------------------------------------------------------
@functools.partial(jax.jit, static_argnames=("n_way", "tq", "tk", "force_tiled"))
def _forward_impl(sup_flat, qry_flat, W, b, pw, *, n_way, tq, tk, force_tiled):
    Ns, K = sup_flat.shape
    Nq = qry_flat.shape[0]
    D = W.shape[1]
    f32, bf16 = jnp.float32, jnp.bfloat16

    K_pad = _round_up(K, _LANE)
    D_pad = _round_up(D, _LANE)
    NW_pad = _round_up(n_way, _LANE)
    Ns_pad = _round_up(Ns, _ROW)

    # Query row tile: multiple of 16 (bf16 packing), capped at `tq`, and sized
    # so n_q >= 2 when possible (lets the "parallel" axis use both v7x cores).
    TQ = max(_ROW, min(_round_up(tq, _ROW), _round_up(-(-Nq // 2), _ROW)))
    Nq_pad = _round_up(Nq, TQ)
    n_q = Nq_pad // TQ

    budget = _vmem_budget_bytes()

    # Working-set estimates (double-buffered inputs/outputs) for the resident-W
    # path; fall back to K-tiling if either kernel would not fit VMEM.
    w_bytes = K_pad * D_pad * 2
    proto_ws = (2 * (Ns_pad * K_pad * 2 + w_bytes + NW_pad * Ns_pad * 4
                     + D_pad * NW_pad * 4 + NW_pad * 4 + D_pad * 4)
                + Ns_pad * D_pad * 4 + NW_pad * D_pad * 4)
    score_ws = (2 * (TQ * K_pad * 2 + w_bytes + D_pad * 4
                     + D_pad * NW_pad * 4 + NW_pad * 4 + TQ * NW_pad * 4)
                + 2 * TQ * D_pad * 4)
    use_resident = (not force_tiled) and max(proto_ws, score_ws) <= budget

    # Zero-padded, bf16 matmul operands (zeros don't affect results).
    sup = jnp.zeros((Ns_pad, K_pad), bf16).at[:Ns, :K].set(sup_flat.astype(bf16))
    qry = jnp.zeros((Nq_pad, K_pad), bf16).at[:Nq, :K].set(qry_flat.astype(bf16))
    Wp = jnp.zeros((K_pad, D_pad), bf16).at[:K, :D].set(W.astype(bf16))
    bp = jnp.zeros((1, D_pad), f32).at[0, :D].set(b.astype(f32))
    pwp = jnp.zeros((NW_pad, Ns_pad), f32).at[:n_way, :Ns].set(pw.astype(f32))

    def cparams(sem):
        return pltpu.CompilerParams(dimension_semantics=sem,
                                    vmem_limit_bytes=budget)

    if use_resident:
        # ---- kernel 1: prototypes + ||p||^2 (single pass, W resident) ----
        z_proto_t, p_norm = pl.pallas_call(
            _proto_resident_kernel,
            out_shape=(jax.ShapeDtypeStruct((D_pad, NW_pad), f32),
                       jax.ShapeDtypeStruct((1, NW_pad), f32)),
            grid_spec=pltpu.PrefetchScalarGridSpec(
                num_scalar_prefetch=0,
                grid=(1,),
                in_specs=[
                    pl.BlockSpec((Ns_pad, K_pad), lambda i: (0, 0)),
                    pl.BlockSpec((K_pad, D_pad), lambda i: (0, 0)),
                    pl.BlockSpec((1, D_pad), lambda i: (0, 0)),
                    pl.BlockSpec((NW_pad, Ns_pad), lambda i: (0, 0)),
                ],
                out_specs=[
                    pl.BlockSpec((D_pad, NW_pad), lambda i: (0, 0)),
                    pl.BlockSpec((1, NW_pad), lambda i: (0, 0)),
                ],
            ),
            compiler_params=cparams(("arbitrary",)),
        )(sup, Wp, bp, pwp)

        # ---- kernel 2: query backbone + scores; W/zp/pn resident, only the
        #      query tile and output stream with the grid. ----
        scores_pad = pl.pallas_call(
            _score_resident_kernel,
            out_shape=jax.ShapeDtypeStruct((Nq_pad, NW_pad), f32),
            grid_spec=pltpu.PrefetchScalarGridSpec(
                num_scalar_prefetch=0,
                grid=(n_q,),
                in_specs=[
                    pl.BlockSpec((TQ, K_pad), lambda i: (i, 0)),
                    pl.BlockSpec((K_pad, D_pad), lambda i: (0, 0)),
                    pl.BlockSpec((1, D_pad), lambda i: (0, 0)),
                    pl.BlockSpec((D_pad, NW_pad), lambda i: (0, 0)),
                    pl.BlockSpec((1, NW_pad), lambda i: (0, 0)),
                ],
                out_specs=pl.BlockSpec((TQ, NW_pad), lambda i: (i, 0)),
            ),
            compiler_params=cparams(("parallel",)),
        )(qry, Wp, bp, z_proto_t, p_norm)
    else:
        # TK: a multiple of 128 that divides K_pad (no over-padding waste).
        units = K_pad // _LANE
        tk_units = max(1, min(units, tk // _LANE))
        best = 1
        for d in range(1, tk_units + 1):
            if units % d == 0:
                best = d
        TK = best * _LANE
        n_k = K_pad // TK

        z_proto_t, p_norm = pl.pallas_call(
            _proto_tiled_kernel,
            out_shape=(jax.ShapeDtypeStruct((D_pad, NW_pad), f32),
                       jax.ShapeDtypeStruct((1, NW_pad), f32)),
            grid_spec=pltpu.PrefetchScalarGridSpec(
                num_scalar_prefetch=0,
                grid=(n_k,),
                in_specs=[
                    pl.BlockSpec((Ns_pad, TK), lambda k: (0, k)),
                    pl.BlockSpec((TK, D_pad), lambda k: (k, 0)),
                    pl.BlockSpec((1, D_pad), lambda k: (0, 0)),
                    pl.BlockSpec((NW_pad, Ns_pad), lambda k: (0, 0)),
                ],
                out_specs=[
                    pl.BlockSpec((D_pad, NW_pad), lambda k: (0, 0)),
                    pl.BlockSpec((1, NW_pad), lambda k: (0, 0)),
                ],
                scratch_shapes=[pltpu.VMEM((Ns_pad, D_pad), f32)],
            ),
            compiler_params=cparams(("arbitrary",)),
        )(sup, Wp, bp, pwp)

        scores_pad = pl.pallas_call(
            _score_tiled_kernel,
            out_shape=jax.ShapeDtypeStruct((Nq_pad, NW_pad), f32),
            grid_spec=pltpu.PrefetchScalarGridSpec(
                num_scalar_prefetch=0,
                grid=(n_q, n_k),
                in_specs=[
                    pl.BlockSpec((TQ, TK), lambda i, k: (i, k)),
                    pl.BlockSpec((TK, D_pad), lambda i, k: (k, 0)),
                    pl.BlockSpec((1, D_pad), lambda i, k: (0, 0)),
                    pl.BlockSpec((D_pad, NW_pad), lambda i, k: (0, 0)),
                    pl.BlockSpec((1, NW_pad), lambda i, k: (0, 0)),
                ],
                out_specs=pl.BlockSpec((TQ, NW_pad), lambda i, k: (i, 0)),
                scratch_shapes=[pltpu.VMEM((TQ, D_pad), f32)],
            ),
            compiler_params=cparams(("parallel", "arbitrary")),
        )(qry, Wp, bp, z_proto_t, p_norm)

    # Mandatory slice: drop padded query rows and padded prototype columns.
    return scores_pad[:Nq, :n_way]


# --------------------------------------------------------------------------
# Public wrapper (matches PrototypicalNetworks.forward semantics).
# --------------------------------------------------------------------------
def prototypical_forward(support_images, support_labels, query_images, W, b,
                         *, tq=256, tk=1024, force_tiled=False):
    Ns = support_images.shape[0]
    Nq = query_images.shape[0]
    K = int(np.prod(support_images.shape[1:]))

    # Class-mean weights built host-side; labels remapped to 0..n_way-1 in
    # sorted-unique order (identical to the PyTorch loop for 0..n_way-1 labels,
    # and well-defined for non-contiguous labels).
    labels_np = np.asarray(support_labels)
    classes = np.unique(labels_np)
    n_way = int(classes.shape[0])
    pw_np = np.zeros((n_way, Ns), np.float32)
    for c, lab in enumerate(classes):
        idx = np.nonzero(labels_np == lab)[0]
        pw_np[c, idx] = 1.0 / len(idx)

    sup_flat = support_images.reshape(Ns, K)
    qry_flat = query_images.reshape(Nq, K)
    return _forward_impl(sup_flat, qry_flat, W, b, jnp.asarray(pw_np),
                         n_way=n_way, tq=tq, tk=tk, force_tiled=force_tiled)


# --------------------------------------------------------------------------
# Pure-JAX reference (same bf16-rounded inputs as the kernel path).
# --------------------------------------------------------------------------
def _reference_forward(support_images, support_labels, query_images, W, b):
    Ns = support_images.shape[0]
    Nq = query_images.shape[0]
    labels = np.asarray(support_labels)
    classes = np.unique(labels)

    rd = lambda x: x.astype(jnp.bfloat16).astype(jnp.float32)
    sup = rd(support_images.reshape(Ns, -1))
    qry = rd(query_images.reshape(Nq, -1))
    Wf = rd(W)

    z_s = jnp.maximum(sup @ Wf + b, 0.0)
    z_q = jnp.maximum(qry @ Wf + b, 0.0)
    z_proto = jnp.stack([z_s[labels == c].mean(0) for c in classes])
    d2 = jnp.sum((z_q[:, None, :] - z_proto[None, :, :]) ** 2, axis=-1)
    return -jnp.sqrt(d2)


if __name__ == "__main__":
    key = jax.random.PRNGKey(0)
    k_sup, k_qry, k_w, k_b = jax.random.split(key, 4)

    # Few-shot episode: n_way=3 classes x 2 shots -> 6 support, 4 query images.
    # Images are NCHW [N, 4, 16, 16]; backbone is Flatten + Linear(1024->32) + ReLU.
    C, H, Wd = 4, 16, 16
    n_way, n_shot, n_query = 3, 2, 4
    feat_dim = 32
    K = C * H * Wd

    support_images = jax.random.normal(k_sup, (n_way * n_shot, C, H, Wd), jnp.float32)
    query_images = jax.random.normal(k_qry, (n_query, C, H, Wd), jnp.float32)
    support_labels = jnp.array([0, 0, 1, 1, 2, 2], dtype=jnp.int32)

    W_param = jax.random.normal(k_w, (K, feat_dim), jnp.float32) * (1.0 / np.sqrt(K))
    b_param = jax.random.normal(k_b, (feat_dim,), jnp.float32) * 0.01

    ref = _reference_forward(support_images, support_labels, query_images,
                             W_param, b_param)

    # Fast path: backbone weight fully resident in VMEM (fetched from HBM once).
    scores = prototypical_forward(support_images, support_labels, query_images,
                                  W_param, b_param)
    scores = jax.block_until_ready(scores)
    assert scores.shape == (n_query, n_way), scores.shape
    np.testing.assert_allclose(np.asarray(scores), np.asarray(ref),
                               rtol=5e-3, atol=5e-3)

    # Also exercise the K-tiled fallback (used when W would not fit VMEM).
    scores_tiled = prototypical_forward(support_images, support_labels,
                                        query_images, W_param, b_param,
                                        tk=512, force_tiled=True)
    scores_tiled = jax.block_until_ready(scores_tiled)
    np.testing.assert_allclose(np.asarray(scores_tiled), np.asarray(ref),
                               rtol=5e-3, atol=5e-3)

    print("KERNEL_OK")
</pallas_src>

<mosaic_0001>
module attributes {stable_mosaic.version = 11 : i64} {
  func.func @_score_resident_kernel(%arg0: i32, %arg1: memref<16x1024xbf16, #tpu.memory_space<vmem>>, %arg2: memref<1024x128xbf16, #tpu.memory_space<vmem>>, %arg3: memref<1x128xf32, #tpu.memory_space<vmem>>, %arg4: memref<128x128xf32, #tpu.memory_space<vmem>>, %arg5: memref<1x128xf32, #tpu.memory_space<vmem>>, %arg6: memref<16x128xf32, #tpu.memory_space<vmem>>) attributes {dimension_semantics = [#tpu.dimension_semantics<parallel>], iteration_bounds = array<i64: 1>, scalar_prefetch = 0 : i64, scratch_operands = 0 : i64, tpu.core_type = #tpu.core_type<tc>, window_params = [{transform_indices = @transform_0, window_bounds = array<i64: 16, 1024>}, {pipeline_mode = #tpu.pipeline_mode<synchronous>, transform_indices = @transform_1, window_bounds = array<i64: 1024, 128>}, {pipeline_mode = #tpu.pipeline_mode<synchronous>, transform_indices = @transform_2, window_bounds = array<i64: 1, 128>}, {pipeline_mode = #tpu.pipeline_mode<synchronous>, transform_indices = @transform_3, window_bounds = array<i64: 128, 128>}, {pipeline_mode = #tpu.pipeline_mode<synchronous>, transform_indices = @transform_4, window_bounds = array<i64: 1, 128>}, {transform_indices = @transform_5, window_bounds = array<i64: 16, 128>}]} {
    %c0 = arith.constant 0 : index
    %c0_0 = arith.constant 0 : index
    %0 = vector.load %arg1[%c0, %c0_0] : memref<16x1024xbf16, #tpu.memory_space<vmem>>, vector<16x1024xbf16>
    %c0_1 = arith.constant 0 : index
    %c0_2 = arith.constant 0 : index
    %1 = vector.load %arg2[%c0_1, %c0_2] : memref<1024x128xbf16, #tpu.memory_space<vmem>>, vector<1024x128xbf16>
    %cst = arith.constant dense<0.000000e+00> : vector<16x128xf32>
    %2 = tpu.matmul %0, %1, %cst {dimension_numbers = #tpu.dot_dimension_numbers<[1], [0], [0], [1], [0, 0, 1, 1], [], []>} : vector<16x1024xbf16>, vector<1024x128xbf16>, vector<16x128xf32> -> vector<16x128xf32>
    %c0_3 = arith.constant 0 : index
    %c0_4 = arith.constant 0 : index
    %3 = vector.load %arg3[%c0_3, %c0_4] : memref<1x128xf32, #tpu.memory_space<vmem>>, vector<1x128xf32>
    %4 = vector.broadcast %3 : vector<1x128xf32> to vector<16x128xf32>
    %5 = arith.addf %2, %4 : vector<16x128xf32>
    %cst_5 = arith.constant 0.000000e+00 : f32
    %6 = vector.broadcast %cst_5 : f32 to vector<16x128xf32>
    %7 = arith.maximumf %5, %6 : vector<16x128xf32>
    %8 = arith.mulf %7, %7 : vector<16x128xf32>
    %cst_6 = arith.constant dense<0.000000e+00> : vector<16xf32>
    %9 = vector.multi_reduction <add>, %8, %cst_6 [1] : vector<16x128xf32> to vector<16xf32>
    %10 = vector.shape_cast %9 : vector<16xf32> to vector<16x1xf32>
    %c0_7 = arith.constant 0 : index
    %c0_8 = arith.constant 0 : index
    %11 = vector.load %arg4[%c0_7, %c0_8] : memref<128x128xf32, #tpu.memory_space<vmem>>, vector<128x128xf32>
    %cst_9 = arith.constant dense<0.000000e+00> : vector<16x128xf32>
    %12 = tpu.matmul %7, %11, %cst_9 {dimension_numbers = #tpu.dot_dimension_numbers<[1], [0], [0], [1], [0, 0, 1, 1], [], []>} : vector<16x128xf32>, vector<128x128xf32>, vector<16x128xf32> -> vector<16x128xf32>
    %c0_10 = arith.constant 0 : index
    %c0_11 = arith.constant 0 : index
    %13 = vector.load %arg5[%c0_10, %c0_11] : memref<1x128xf32, #tpu.memory_space<vmem>>, vector<1x128xf32>
    %14 = vector.broadcast %10 : vector<16x1xf32> to vector<16x128xf32>
    %15 = vector.broadcast %13 : vector<1x128xf32> to vector<16x128xf32>
    %16 = arith.addf %14, %15 : vector<16x128xf32>
    %cst_12 = arith.constant 2.000000e+00 : f32
    %17 = vector.broadcast %cst_12 : f32 to vector<16x128xf32>
    %18 = arith.mulf %17, %12 : vector<16x128xf32>
    %19 = arith.subf %16, %18 : vector<16x128xf32>
    %cst_13 = arith.constant 0.000000e+00 : f32
    %20 = vector.broadcast %cst_13 : f32 to vector<16x128xf32>
    %21 = arith.maximumf %19, %20 : vector<16x128xf32>
    %22 = math.sqrt %21 : vector<16x128xf32>
    %cst_14 = arith.constant 0.000000e+00 : f32
    %23 = vector.broadcast %cst_14 : f32 to vector<16x128xf32>
    %24 = arith.subf %23, %22 : vector<16x128xf32>
    %c0_15 = arith.constant 0 : index
    %c0_16 = arith.constant 0 : index
    %25 = vector.load %arg6[%c0_15, %c0_16] : memref<16x128xf32, #tpu.memory_space<vmem>>, vector<16x128xf32>
    tpu.vector_store %arg6[%c0_15, %c0_16], %24 {strides = array<i32>} : memref<16x128xf32, #tpu.memory_space<vmem>>, vector<16x128xf32>,
    return
  }
  func.func @transform_0(%arg0: i32) -> (i32, i32) {
    %c0_i32 = arith.constant 0 : i32
    %c0_i32_0 = arith.constant 0 : i32
    return %arg0, %c0_i32 : i32, i32
  }
  func.func @transform_1(%arg0: i32) -> (i32, i32) {
    %c0_i32 = arith.constant 0 : i32
    %c0_i32_0 = arith.constant 0 : i32
    %c0_i32_1 = arith.constant 0 : i32
    return %c0_i32, %c0_i32_0 : i32, i32
  }
  func.func @transform_2(%arg0: i32) -> (i32, i32) {
    %c0_i32 = arith.constant 0 : i32
    %c0_i32_0 = arith.constant 0 : i32
    %c0_i32_1 = arith.constant 0 : i32
    return %c0_i32, %c0_i32_0 : i32, i32
  }
  func.func @transform_3(%arg0: i32) -> (i32, i32) {
    %c0_i32 = arith.constant 0 : i32
    %c0_i32_0 = arith.constant 0 : i32
    %c0_i32_1 = arith.constant 0 : i32
    return %c0_i32, %c0_i32_0 : i32, i32
  }
  func.func @transform_4(%arg0: i32) -> (i32, i32) {
    %c0_i32 = arith.constant 0 : i32
    %c0_i32_0 = arith.constant 0 : i32
    %c0_i32_1 = arith.constant 0 : i32
    return %c0_i32, %c0_i32_0 : i32, i32
  }
  func.func @transform_5(%arg0: i32) -> (i32, i32) {
    %c0_i32 = arith.constant 0 : i32
    %c0_i32_0 = arith.constant 0 : i32
    return %arg0, %c0_i32 : i32, i32
  }
}

module attributes {stable_mosaic.version = 11 : i64} {
  func.func @_proto_resident_kernel(%arg0: i32, %arg1: memref<16x1024xbf16, #tpu.memory_space<vmem>>, %arg2: memref<1024x128xbf16, #tpu.memory_space<vmem>>, %arg3: memref<1x128xf32, #tpu.memory_space<vmem>>, %arg4: memref<128x16xf32, #tpu.memory_space<vmem>>, %arg5: memref<128x128xf32, #tpu.memory_space<vmem>>, %arg6: memref<1x128xf32, #tpu.memory_space<vmem>>) attributes {dimension_semantics = [#tpu.dimension_semantics<arbitrary>], iteration_bounds = array<i64: 1>, scalar_prefetch = 0 : i64, scratch_operands = 0 : i64, tpu.core_type = #tpu.core_type<tc>, window_params = [{pipeline_mode = #tpu.pipeline_mode<synchronous>, transform_indices = @transform_0, window_bounds = array<i64: 16, 1024>}, {pipeline_mode = #tpu.pipeline_mode<synchronous>, transform_indices = @transform_1, window_bounds = array<i64: 1024, 128>}, {pipeline_mode = #tpu.pipeline_mode<synchronous>, transform_indices = @transform_2, window_bounds = array<i64: 1, 128>}, {pipeline_mode = #tpu.pipeline_mode<synchronous>, transform_indices = @transform_3, window_bounds = array<i64: 128, 16>}, {pipeline_mode = #tpu.pipeline_mode<synchronous>, transform_indices = @transform_4, window_bounds = array<i64: 128, 128>}, {pipeline_mode = #tpu.pipeline_mode<synchronous>, transform_indices = @transform_5, window_bounds = array<i64: 1, 128>}]} {
    %c0 = arith.constant 0 : index
    %c0_0 = arith.constant 0 : index
    %0 = vector.load %arg1[%c0, %c0_0] : memref<16x1024xbf16, #tpu.memory_space<vmem>>, vector<16x1024xbf16>
    %c0_1 = arith.constant 0 : index
    %c0_2 = arith.constant 0 : index
    %1 = vector.load %arg2[%c0_1, %c0_2] : memref<1024x128xbf16, #tpu.memory_space<vmem>>, vector<1024x128xbf16>
    %cst = arith.constant dense<0.000000e+00> : vector<16x128xf32>
    %2 = tpu.matmul %0, %1, %cst {dimension_numbers = #tpu.dot_dimension_numbers<[1], [0], [0], [1], [0, 0, 1, 1], [], []>} : vector<16x1024xbf16>, vector<1024x128xbf16>, vector<16x128xf32> -> vector<16x128xf32>
    %c0_3 = arith.constant 0 : index
    %c0_4 = arith.constant 0 : index
    %3 = vector.load %arg3[%c0_3, %c0_4] : memref<1x128xf32, #tpu.memory_space<vmem>>, vector<1x128xf32>
    %4 = vector.broadcast %3 : vector<1x128xf32> to vector<16x128xf32>
    %5 = arith.addf %2, %4 : vector<16x128xf32>
    %cst_5 = arith.constant 0.000000e+00 : f32
    %6 = vector.broadcast %cst_5 : f32 to vector<16x128xf32>
    %7 = arith.maximumf %5, %6 : vector<16x128xf32>
    %c0_6 = arith.constant 0 : index
    %c0_7 = arith.constant 0 : index
    %8 = vector.load %arg4[%c0_6, %c0_7] : memref<128x16xf32, #tpu.memory_space<vmem>>, vector<128x16xf32>
    %cst_8 = arith.constant dense<0.000000e+00> : vector<128x128xf32>
    %9 = tpu.matmul %8, %7, %cst_8 {dimension_numbers = #tpu.dot_dimension_numbers<[1], [0], [0], [1], [0, 0, 1, 1], [], []>} : vector<128x16xf32>, vector<16x128xf32>, vector<128x128xf32> -> vector<128x128xf32>
    %10 = tpu.transpose %9, [1, 0] : vector<128x128xf32> -> vector<128x128xf32>
    %c0_9 = arith.constant 0 : index
    %c0_10 = arith.constant 0 : index
    %11 = vector.load %arg5[%c0_9, %c0_10] : memref<128x128xf32, #tpu.memory_space<vmem>>, vector<128x128xf32>
    tpu.vector_store %arg5[%c0_9, %c0_10], %10 {strides = array<i32>} : memref<128x128xf32, #tpu.memory_space<vmem>>, vector<128x128xf32>,
    %12 = arith.mulf %10, %10 : vector<128x128xf32>
    %cst_11 = arith.constant dense<0.000000e+00> : vector<128xf32>
    %13 = vector.multi_reduction <add>, %12, %cst_11 [0] : vector<128x128xf32> to vector<128xf32>
    %14 = vector.shape_cast %13 : vector<128xf32> to vector<1x128xf32>
    %c0_12 = arith.constant 0 : index
    %c0_13 = arith.constant 0 : index
    %15 = vector.load %arg6[%c0_12, %c0_13] : memref<1x128xf32, #tpu.memory_space<vmem>>, vector<1x128xf32>
    tpu.vector_store %arg6[%c0_12, %c0_13], %14 {strides = array<i32>} : memref<1x128xf32, #tpu.memory_space<vmem>>, vector<1x128xf32>,
    return
  }
  func.func @transform_0(%arg0: i32) -> (i32, i32) {
    %c0_i32 = arith.constant 0 : i32
    %c0_i32_0 = arith.constant 0 : i32
    %c0_i32_1 = arith.constant 0 : i32
    return %c0_i32, %c0_i32_0 : i32, i32
  }
  func.func @transform_1(%arg0: i32) -> (i32, i32) {
    %c0_i32 = arith.constant 0 : i32
    %c0_i32_0 = arith.constant 0 : i32
    %c0_i32_1 = arith.constant 0 : i32
    return %c0_i32, %c0_i32_0 : i32, i32
  }
  func.func @transform_2(%arg0: i32) -> (i32, i32) {
    %c0_i32 = arith.constant 0 : i32
    %c0_i32_0 = arith.constant 0 : i32
    %c0_i32_1 = arith.constant 0 : i32
    return %c0_i32, %c0_i32_0 : i32, i32
  }
  func.func @transform_3(%arg0: i32) -> (i32, i32) {
    %c0_i32 = arith.constant 0 : i32
    %c0_i32_0 = arith.constant 0 : i32
    %c0_i32_1 = arith.constant 0 : i32
    return %c0_i32, %c0_i32_0 : i32, i32
  }
  func.func @transform_4(%arg0: i32) -> (i32, i32) {
    %c0_i32 = arith.constant 0 : i32
    %c0_i32_0 = arith.constant 0 : i32
    %c0_i32_1 = arith.constant 0 : i32
    return %c0_i32, %c0_i32_0 : i32, i32
  }
  func.func @transform_5(%arg0: i32) -> (i32, i32) {
    %c0_i32 = arith.constant 0 : i32
    %c0_i32_0 = arith.constant 0 : i32
    %c0_i32_1 = arith.constant 0 : i32
    return %c0_i32, %c0_i32_0 : i32, i32
  }
}

</mosaic_0001>

<llo_original>
// kernel: _forward_impl.3
$region0: #{_forward_impl.3}
  #allocation0 [shape = 'u32[]', space=smem, size = 0x4, offset = 0x4, fixed_abs, tag = 'smem constant byte address 0x4 - core index']
  #allocation1 [shape = 'u32[144,128]{1,0:T(1,128)}', space=vmem, size = 0x12000, scoped, tag = 'internal scratch']
  %s0 = inlined_call_operand.vmem [shape: bf16[16,1024], index: 0, kind: input, shape index: {}]
  %s1 = inlined_call_operand.vmem [shape: bf16[1024,128], index: 1, kind: input, shape index: {}]
  %s2 = inlined_call_operand.vmem [shape: f32[1,128], index: 2, kind: input, shape index: {}]
  %s3 = inlined_call_operand.vmem [shape: f32[128,128], index: 3, kind: input, shape index: {}]
  %s4 = inlined_call_operand.vmem [shape: f32[1,128], index: 4, kind: input, shape index: {}]
  %s5 = inlined_call_operand.vmem [shape: f32[16,128], index: 5, kind: output, shape index: {}]
  %s6 = sld [smem:[#allocation0]]
  $region30: #{_forward_impl.3} parent=0
    _
  %s8 = ssub.s32 1, %s6
  %s9 = scalar_select 0, %s8, %s6
  // Predicated region
  $region2: #{_forward_impl.3} parent=0 // pred_check
    _
  $region3: #{_forward_impl.3} parent=0 // pred_check_branch
    %11 = sbr.rel (0) target = $region5
  $region4: #{_forward_impl.3} parent=0 // pred_region
    _
  $region5: #{_forward_impl.3} parent=0 // pred_fallthru
    _
  // Predicated region
  $region6: #{_forward_impl.3} parent=0 // pred_check
    _
  $region7: #{_forward_impl.3} parent=0 // pred_check_branch
    %13 = sbr.rel (0) target = $region9
  $region8: #{_forward_impl.3} parent=0 // pred_region
    _
  $region9: #{_forward_impl.3} parent=0 // pred_fallthru
    _
  // Predicated region
  $region10: #{_forward_impl.3} parent=0 // pred_check
    _
  $region11: #{_forward_impl.3} parent=0 // pred_check_branch
    %15 = sbr.rel (0) target = $region13
  $region12: #{_forward_impl.3} parent=0 // pred_region
    _
  $region13: #{_forward_impl.3} parent=0 // pred_fallthru
    _
  // Predicated region
  $region14: #{_forward_impl.3} parent=0 // pred_check
    _
  $region15: #{_forward_impl.3} parent=0 // pred_check_branch
    %17 = sbr.rel (0) target = $region17
  $region16: #{_forward_impl.3} parent=0 // pred_region
    _
  $region17: #{_forward_impl.3} parent=0 // pred_fallthru
    _
  // Predicated region
  $region18: #{_forward_impl.3} parent=0 // pred_check
    _
  $region19: #{_forward_impl.3} parent=0 // pred_check_branch
    %19 = sbr.rel (0) target = $region21
  $region20: #{_forward_impl.3} parent=0 // pred_region
    _
  $region21: #{_forward_impl.3} parent=0 // pred_fallthru
    _
  %v21 = vld [vmem:[%s0] sm:$0xff]
  %v22 = vld [vmem:[%s0 + $0x8] sm:$0xff]
  %v23 = vld [vmem:[%s0 + $0x10] sm:$0xff]
  %v24 = vld [vmem:[%s0 + $0x18] sm:$0xff]
  %v25 = vld [vmem:[%s0 + $0x20] sm:$0xff]
  %v26 = vld [vmem:[%s0 + $0x28] sm:$0xff]
  %v27 = vld [vmem:[%s0 + $0x30] sm:$0xff]
  %v28 = vld [vmem:[%s0 + $0x38] sm:$0xff]
  %v29 = vld [vmem:[%s1] sm:$0xf]
  %v30 = vld [vmem:[%s1 + $0x4] sm:$0xf]
  %v31 = vld [vmem:[%s1 + $0x8] sm:$0xf]
  %v32 = vld [vmem:[%s1 + $0xc] sm:$0xf]
  %v33 = vld [vmem:[%s1 + $0x10] sm:$0xf]
  %v34 = vld [vmem:[%s1 + $0x14] sm:$0xf]
  %v35 = vld [vmem:[%s1 + $0x18] sm:$0xf]
  %v36 = vld [vmem:[%s1 + $0x1c] sm:$0xf]
  %v37 = vld [vmem:[%s1 + $0x20] sm:$0xf]
  %v38 = vld [vmem:[%s1 + $0x24] sm:$0xf]
  %v39 = vld [vmem:[%s1 + $0x28] sm:$0xf]
  %v40 = vld [vmem:[%s1 + $0x2c] sm:$0xf]
  %v41 = vld [vmem:[%s1 + $0x30] sm:$0xf]
  %v42 = vld [vmem:[%s1 + $0x34] sm:$0xf]
  %v43 = vld [vmem:[%s1 + $0x38] sm:$0xf]
  %v44 = vld [vmem:[%s1 + $0x3c] sm:$0xf]
  %v45 = vld [vmem:[%s1 + $0x40] sm:$0xf]
  %v46 = vld [vmem:[%s1 + $0x44] sm:$0xf]
  %v47 = vld [vmem:[%s1 + $0x48] sm:$0xf]
  %v48 = vld [vmem:[%s1 + $0x4c] sm:$0xf]
  %v49 = vld [vmem:[%s1 + $0x50] sm:$0xf]
  %v50 = vld [vmem:[%s1 + $0x54] sm:$0xf]
  %v51 = vld [vmem:[%s1 + $0x58] sm:$0xf]
  %v52 = vld [vmem:[%s1 + $0x5c] sm:$0xf]
  %v53 = vld [vmem:[%s1 + $0x60] sm:$0xf]
  %v54 = vld [vmem:[%s1 + $0x64] sm:$0xf]
  %v55 = vld [vmem:[%s1 + $0x68] sm:$0xf]
  %v56 = vld [vmem:[%s1 + $0x6c] sm:$0xf]
  %v57 = vld [vmem:[%s1 + $0x70] sm:$0xf]
  %v58 = vld [vmem:[%s1 + $0x74] sm:$0xf]
  %v59 = vld [vmem:[%s1 + $0x78] sm:$0xf]
  %v60 = vld [vmem:[%s1 + $0x7c] sm:$0xf]
  %v61 = vld [vmem:[%s1 + $0x80] sm:$0xf]
  %v62 = vld [vmem:[%s1 + $0x84] sm:$0xf]
  %v63 = vld [vmem:[%s1 + $0x88] sm:$0xf]
  %v64 = vld [vmem:[%s1 + $0x8c] sm:$0xf]
  %v65 = vld [vmem:[%s1 + $0x90] sm:$0xf]
  %v66 = vld [vmem:[%s1 + $0x94] sm:$0xf]
  %v67 = vld [vmem:[%s1 + $0x98] sm:$0xf]
  %v68 = vld [vmem:[%s1 + $0x9c] sm:$0xf]
  %v69 = vld [vmem:[%s1 + $0xa0] sm:$0xf]
  %v70 = vld [vmem:[%s1 + $0xa4] sm:$0xf]
  %v71 = vld [vmem:[%s1 + $0xa8] sm:$0xf]
  %v72 = vld [vmem:[%s1 + $0xac] sm:$0xf]
  %v73 = vld [vmem:[%s1 + $0xb0] sm:$0xf]
  %v74 = vld [vmem:[%s1 + $0xb4] sm:$0xf]
  %v75 = vld [vmem:[%s1 + $0xb8] sm:$0xf]
  %v76 = vld [vmem:[%s1 + $0xbc] sm:$0xf]
  %v77 = vld [vmem:[%s1 + $0xc0] sm:$0xf]
  %v78 = vld [vmem:[%s1 + $0xc4] sm:$0xf]
  %v79 = vld [vmem:[%s1 + $0xc8] sm:$0xf]
  %v80 = vld [vmem:[%s1 + $0xcc] sm:$0xf]
  %v81 = vld [vmem:[%s1 + $0xd0] sm:$0xf]
  %v82 = vld [vmem:[%s1 + $0xd4] sm:$0xf]
  %v83 = vld [vmem:[%s1 + $0xd8] sm:$0xf]
  %v84 = vld [vmem:[%s1 + $0xdc] sm:$0xf]
  %v85 = vld [vmem:[%s1 + $0xe0] sm:$0xf]
  %v86 = vld [vmem:[%s1 + $0xe4] sm:$0xf]
  %v87 = vld [vmem:[%s1 + $0xe8] sm:$0xf]
  %v88 = vld [vmem:[%s1 + $0xec] sm:$0xf]
  %v89 = vld [vmem:[%s1 + $0xf0] sm:$0xf]
  %v90 = vld [vmem:[%s1 + $0xf4] sm:$0xf]
  %v91 = vld [vmem:[%s1 + $0xf8] sm:$0xf]
  %v92 = vld [vmem:[%s1 + $0xfc] sm:$0xf]
  %v93 = vld [vmem:[%s1 + $0x100] sm:$0xf]
  %v94 = vld [vmem:[%s1 + $0x104] sm:$0xf]
  %v95 = vld [vmem:[%s1 + $0x108] sm:$0xf]
  %v96 = vld [vmem:[%s1 + $0x10c] sm:$0xf]
  %v97 = vld [vmem:[%s1 + $0x110] sm:$0xf]
  %v98 = vld [vmem:[%s1 + $0x114] sm:$0xf]
  %v99 = vld [vmem:[%s1 + $0x118] sm:$0xf]
  %v100 = vld [vmem:[%s1 + $0x11c] sm:$0xf]
  %v101 = vld [vmem:[%s1 + $0x120] sm:$0xf]
  %v102 = vld [vmem:[%s1 + $0x124] sm:$0xf]
  %v103 = vld [vmem:[%s1 + $0x128] sm:$0xf]
  %v104 = vld [vmem:[%s1 + $0x12c] sm:$0xf]
  %v105 = vld [vmem:[%s1 + $0x130] sm:$0xf]
  %v106 = vld [vmem:[%s1 + $0x134] sm:$0xf]
  %v107 = vld [vmem:[%s1 + $0x138] sm:$0xf]
  %v108 = vld [vmem:[%s1 + $0x13c] sm:$0xf]
  %v109 = vld [vmem:[%s1 + $0x140] sm:$0xf]
  %v110 = vld [vmem:[%s1 + $0x144] sm:$0xf]
  %v111 = vld [vmem:[%s1 + $0x148] sm:$0xf]
  %v112 = vld [vmem:[%s1 + $0x14c] sm:$0xf]
  %v113 = vld [vmem:[%s1 + $0x150] sm:$0xf]
  %v114 = vld [vmem:[%s1 + $0x154] sm:$0xf]
  %v115 = vld [vmem:[%s1 + $0x158] sm:$0xf]
  %v116 = vld [vmem:[%s1 + $0x15c] sm:$0xf]
  %v117 = vld [vmem:[%s1 + $0x160] sm:$0xf]
  %v118 = vld [vmem:[%s1 + $0x164] sm:$0xf]
  %v119 = vld [vmem:[%s1 + $0x168] sm:$0xf]
  %v120 = vld [vmem:[%s1 + $0x16c] sm:$0xf]
  %v121 = vld [vmem:[%s1 + $0x170] sm:$0xf]
  %v122 = vld [vmem:[%s1 + $0x174] sm:$0xf]
  %v123 = vld [vmem:[%s1 + $0x178] sm:$0xf]
  %v124 = vld [vmem:[%s1 + $0x17c] sm:$0xf]
  %v125 = vld [vmem:[%s1 + $0x180] sm:$0xf]
  %v126 = vld [vmem:[%s1 + $0x184] sm:$0xf]
  %v127 = vld [vmem:[%s1 + $0x188] sm:$0xf]
  %v128 = vld [vmem:[%s1 + $0x18c] sm:$0xf]
  %v129 = vld [vmem:[%s1 + $0x190] sm:$0xf]
  %v130 = vld [vmem:[%s1 + $0x194] sm:$0xf]
  %v131 = vld [vmem:[%s1 + $0x198] sm:$0xf]
  %v132 = vld [vmem:[%s1 + $0x19c] sm:$0xf]
  %v133 = vld [vmem:[%s1 + $0x1a0] sm:$0xf]
  %v134 = vld [vmem:[%s1 + $0x1a4] sm:$0xf]
  %v135 = vld [vmem:[%s1 + $0x1a8] sm:$0xf]
  %v136 = vld [vmem:[%s1 + $0x1ac] sm:$0xf]
  %v137 = vld [vmem:[%s1 + $0x1b0] sm:$0xf]
  %v138 = vld [vmem:[%s1 + $0x1b4] sm:$0xf]
  %v139 = vld [vmem:[%s1 + $0x1b8] sm:$0xf]
  %v140 = vld [vmem:[%s1 + $0x1bc] sm:$0xf]
  %v141 = vld [vmem:[%s1 + $0x1c0] sm:$0xf]
  %v142 = vld [vmem:[%s1 + $0x1c4] sm:$0xf]
  %v143 = vld [vmem:[%s1 + $0x1c8] sm:$0xf]
  %v144 = vld [vmem:[%s1 + $0x1cc] sm:$0xf]
  %v145 = vld [vmem:[%s1 + $0x1d0] sm:$0xf]
  %v146 = vld [vmem:[%s1 + $0x1d4] sm:$0xf]
  %v147 = vld [vmem:[%s1 + $0x1d8] sm:$0xf]
  %v148 = vld [vmem:[%s1 + $0x1dc] sm:$0xf]
  %v149 = vld [vmem:[%s1 + $0x1e0] sm:$0xf]
  %v150 = vld [vmem:[%s1 + $0x1e4] sm:$0xf]
  %v151 = vld [vmem:[%s1 + $0x1e8] sm:$0xf]
  %v152 = vld [vmem:[%s1 + $0x1ec] sm:$0xf]
  %v153 = vld [vmem:[%s1 + $0x1f0] sm:$0xf]
  %v154 = vld [vmem:[%s1 + $0x1f4] sm:$0xf]
  %v155 = vld [vmem:[%s1 + $0x1f8] sm:$0xf]
  %v156 = vld [vmem:[%s1 + $0x1fc] sm:$0xf]
  %v157 = vld [vmem:[%s2] sm:$0x1]
  %v159 = vlaneseq
  %v160 = vshrl.u32 %v159, 7
  %v161 = vsub.s32 0, %v160
  %v162 = vrot.slane %v157, %v161
  %v172 = vunpack.c.l.b16 %v21
  %v173 = vunpack.c.h.b16 %v21
  %v174 = vunpack.c.l.b16 %v22
  %v175 = vunpack.c.h.b16 %v22
  %v176 = vunpack.c.l.b16 %v23
  %v177 = vunpack.c.h.b16 %v23
  %v178 = vunpack.c.l.b16 %v24
  %v179 = vunpack.c.h.b16 %v24
  %v180 = vunpack.c.l.b16 %v25
  %v181 = vunpack.c.h.b16 %v25
  %v182 = vunpack.c.l.b16 %v26
  %v183 = vunpack.c.h.b16 %v26
  %v184 = vunpack.c.l.b16 %v27
  %v185 = vunpack.c.h.b16 %v27
  %v186 = vunpack.c.l.b16 %v28
  %v187 = vunpack.c.h.b16 %v28
  %v188 = vpack.c.b16 %v180, %v172
  %v189 = vpack.c.b16 %v181, %v173
  %v190 = vpack.c.b16 %v182, %v174
  %v191 = vpack.c.b16 %v183, %v175
  %v192 = vpack.c.b16 %v184, %v176
  %v193 = vpack.c.b16 %v185, %v177
  %v194 = vpack.c.b16 %v186, %v178
  %v195 = vpack.c.b16 %v187, %v179
  %v332 = vunpack.c.l.b16 %v29
  %v333 = vunpack.c.l.b16 %v30
  %v334 = vunpack.c.l.b16 %v31
  %v335 = vunpack.c.l.b16 %v32
  %v336 = vunpack.c.l.b16 %v33
  %v337 = vunpack.c.l.b16 %v34
  %v338 = vunpack.c.l.b16 %v35
  %v339 = vunpack.c.l.b16 %v36
  %v340 = vunpack.c.l.b16 %v37
  %v341 = vunpack.c.l.b16 %v38
  %v342 = vunpack.c.l.b16 %v39
  %v343 = vunpack.c.l.b16 %v40
  %v344 = vunpack.c.l.b16 %v41
  %v345 = vunpack.c.l.b16 %v42
  %v346 = vunpack.c.l.b16 %v43
  %v347 = vunpack.c.l.b16 %v44
  %v348 = vunpack.c.l.b16 %v45
  %v349 = vunpack.c.l.b16 %v46
  %v350 = vunpack.c.l.b16 %v47
  %v351 = vunpack.c.l.b16 %v48
  %v352 = vunpack.c.l.b16 %v49
  %v353 = vunpack.c.l.b16 %v50
  %v354 = vunpack.c.l.b16 %v51
  %v355 = vunpack.c.l.b16 %v52
  %v356 = vunpack.c.l.b16 %v53
  %v357 = vunpack.c.l.b16 %v54
  %v358 = vunpack.c.l.b16 %v55
  %v359 = vunpack.c.l.b16 %v56
  %v360 = vunpack.c.l.b16 %v57
  %v361 = vunpack.c.l.b16 %v58
  %v362 = vunpack.c.l.b16 %v59
  %v363 = vunpack.c.l.b16 %v60
  %v364 = vunpack.c.l.b16 %v61
  %v365 = vunpack.c.l.b16 %v62
  %v366 = vunpack.c.l.b16 %v63
  %v367 = vunpack.c.l.b16 %v64
  %v368 = vunpack.c.l.b16 %v65
  %v369 = vunpack.c.l.b16 %v66
  %v370 = vunpack.c.l.b16 %v67
  %v371 = vunpack.c.l.b16 %v68
  %v372 = vunpack.c.l.b16 %v69
  %v373 = vunpack.c.l.b16 %v70
  %v374 = vunpack.c.l.b16 %v71
  %v375 = vunpack.c.l.b16 %v72
  %v376 = vunpack.c.l.b16 %v73
  %v377 = vunpack.c.l.b16 %v74
  %v378 = vunpack.c.l.b16 %v75
  %v379 = vunpack.c.l.b16 %v76
  %v380 = vunpack.c.l.b16 %v77
  %v381 = vunpack.c.l.b16 %v78
  %v382 = vunpack.c.l.b16 %v79
  %v383 = vunpack.c.l.b16 %v80
  %v384 = vunpack.c.l.b16 %v81
  %v385 = vunpack.c.l.b16 %v82
  %v386 = vunpack.c.l.b16 %v83
  %v387 = vunpack.c.l.b16 %v84
  %v388 = vunpack.c.l.b16 %v85
  %v389 = vunpack.c.l.b16 %v86
  %v390 = vunpack.c.l.b16 %v87
  %v391 = vunpack.c.l.b16 %v88
  %v392 = vunpack.c.l.b16 %v89
  %v393 = vunpack.c.l.b16 %v90
  %v394 = vunpack.c.l.b16 %v91
  %v395 = vunpack.c.l.b16 %v92
  %v396 = vunpack.c.l.b16 %v93
  %v397 = vunpack.c.l.b16 %v94
  %v398 = vunpack.c.l.b16 %v95
  %v399 = vunpack.c.l.b16 %v96
  %v400 = vunpack.c.l.b16 %v97
  %v401 = vunpack.c.l.b16 %v98
  %v402 = vunpack.c.l.b16 %v99
  %v403 = vunpack.c.l.b16 %v100
  %v404 = vunpack.c.l.b16 %v101
  %v405 = vunpack.c.l.b16 %v102
  %v406 = vunpack.c.l.b16 %v103
  %v407 = vunpack.c.l.b16 %v104
  %v408 = vunpack.c.l.b16 %v105
  %v409 = vunpack.c.l.b16 %v106
  %v410 = vunpack.c.l.b16 %v107
  %v411 = vunpack.c.l.b16 %v108
  %v412 = vunpack.c.l.b16 %v109
  %v413 = vunpack.c.l.b16 %v110
  %v414 = vunpack.c.l.b16 %v111
  %v415 = vunpack.c.l.b16 %v112
  %v416 = vunpack.c.l.b16 %v113
  %v417 = vunpack.c.l.b16 %v114
  %v418 = vunpack.c.l.b16 %v115
  %v419 = vunpack.c.l.b16 %v116
  %v420 = vunpack.c.l.b16 %v117
  %v421 = vunpack.c.l.b16 %v118
  %v422 = vunpack.c.l.b16 %v119
  %v423 = vunpack.c.l.b16 %v120
  %v424 = vunpack.c.l.b16 %v121
  %v425 = vunpack.c.l.b16 %v122
  %v426 = vunpack.c.l.b16 %v123
  %v427 = vunpack.c.l.b16 %v124
  %v428 = vunpack.c.l.b16 %v125
  %v429 = vunpack.c.l.b16 %v126
  %v430 = vunpack.c.l.b16 %v127
  %v431 = vunpack.c.l.b16 %v128
  %v432 = vunpack.c.l.b16 %v129
  %v433 = vunpack.c.l.b16 %v130
  %v434 = vunpack.c.l.b16 %v131
  %v435 = vunpack.c.l.b16 %v132
  %v436 = vunpack.c.l.b16 %v133
  %v437 = vunpack.c.l.b16 %v134
  %v438 = vunpack.c.l.b16 %v135
  %v439 = vunpack.c.l.b16 %v136
  %v440 = vunpack.c.l.b16 %v137
  %v441 = vunpack.c.l.b16 %v138
  %v442 = vunpack.c.l.b16 %v139
  %v443 = vunpack.c.l.b16 %v140
  %v444 = vunpack.c.l.b16 %v141
  %v445 = vunpack.c.l.b16 %v142
  %v446 = vunpack.c.l.b16 %v143
  %v447 = vunpack.c.l.b16 %v144
  %v448 = vunpack.c.l.b16 %v145
  %v449 = vunpack.c.l.b16 %v146
  %v450 = vunpack.c.l.b16 %v147
  %v451 = vunpack.c.l.b16 %v148
  %v452 = vunpack.c.l.b16 %v149
  %v453 = vunpack.c.l.b16 %v150
  %v454 = vunpack.c.l.b16 %v151
  %v455 = vunpack.c.l.b16 %v152
  %v456 = vunpack.c.l.b16 %v153
  %v457 = vunpack.c.l.b16 %v154
  %v458 = vunpack.c.l.b16 %v155
  %v459 = vunpack.c.l.b16 %v156
  %v460 = vpack.c.b16 %v333, %v332
  %v461 = vpack.c.b16 %v335, %v334
  %v462 = vpack.c.b16 %v337, %v336
  %v463 = vpack.c.b16 %v339, %v338
  %v464 = vpack.c.b16 %v341, %v340
  %v465 = vpack.c.b16 %v343, %v342
  %v466 = vpack.c.b16 %v345, %v344
  %v467 = vpack.c.b16 %v347, %v346
  %v468 = vpack.c.b16 %v349, %v348
  %v469 = vpack.c.b16 %v351, %v350
  %v470 = vpack.c.b16 %v353, %v352
  %v471 = vpack.c.b16 %v355, %v354
  %v472 = vpack.c.b16 %v357, %v356
  %v473 = vpack.c.b16 %v359, %v358
  %v474 = vpack.c.b16 %v361, %v360
  %v475 = vpack.c.b16 %v363, %v362
  %v476 = vpack.c.b16 %v365, %v364
  %v477 = vpack.c.b16 %v367, %v366
  %v478 = vpack.c.b16 %v369, %v368
  %v479 = vpack.c.b16 %v371, %v370
  %v480 = vpack.c.b16 %v373, %v372
  %v481 = vpack.c.b16 %v375, %v374
  %v482 = vpack.c.b16 %v377, %v376
  %v483 = vpack.c.b16 %v379, %v378
  %v484 = vpack.c.b16 %v381, %v380
  %v485 = vpack.c.b16 %v383, %v382
  %v486 = vpack.c.b16 %v385, %v384
  %v487 = vpack.c.b16 %v387, %v386
  %v488 = vpack.c.b16 %v389, %v388
  %v489 = vpack.c.b16 %v391, %v390
  %v490 = vpack.c.b16 %v393, %v392
  %v491 = vpack.c.b16 %v395, %v394
  %v492 = vpack.c.b16 %v397, %v396
  %v493 = vpack.c.b16 %v399, %v398
  %v494 = vpack.c.b16 %v401, %v400
  %v495 = vpack.c.b16 %v403, %v402
  %v496 = vpack.c.b16 %v405, %v404
  %v497 = vpack.c.b16 %v407, %v406
  %v498 = vpack.c.b16 %v409, %v408
  %v499 = vpack.c.b16 %v411, %v410
  %v500 = vpack.c.b16 %v413, %v412
  %v501 = vpack.c.b16 %v415, %v414
  %v502 = vpack.c.b16 %v417, %v416
  %v503 = vpack.c.b16 %v419, %v418
  %v504 = vpack.c.b16 %v421, %v420
  %v505 = vpack.c.b16 %v423, %v422
  %v506 = vpack.c.b16 %v425, %v424
  %v507 = vpack.c.b16 %v427, %v426
  %v508 = vpack.c.b16 %v429, %v428
  %v509 = vpack.c.b16 %v431, %v430
  %v510 = vpack.c.b16 %v433, %v432
  %v511 = vpack.c.b16 %v435, %v434
  %v512 = vpack.c.b16 %v437, %v436
  %v513 = vpack.c.b16 %v439, %v438
  %v514 = vpack.c.b16 %v441, %v440
  %v515 = vpack.c.b16 %v443, %v442
  %v516 = vpack.c.b16 %v445, %v444
  %v517 = vpack.c.b16 %v447, %v446
  %v518 = vpack.c.b16 %v449, %v448
  %v519 = vpack.c.b16 %v451, %v450
  %v520 = vpack.c.b16 %v453, %v452
  %v521 = vpack.c.b16 %v455, %v454
  %v522 = vpack.c.b16 %v457, %v456
  %v523 = vpack.c.b16 %v459, %v458
  %588 = vmatprep.subr.bf16.mxu0 0
  %589 = vmatpush1.bf16.msra.mxu0 %v460
  %590 = vmatprep.subr.bf16.mxu0 0
  %591 = vmatpush1.bf16.msra.mxu0 %v461
  %592 = vmatprep.subr.bf16.mxu0 0
  %593 = vmatpush1.bf16.msra.mxu0 %v462
  %594 = vmatprep.subr.bf16.mxu0 0
  %595 = vmatpush1.bf16.msra.mxu0 %v463
  %596 = vmatprep.subr.bf16.mxu0 0
  %597 = vmatpush1.bf16.msra.mxu0 %v464
  %598 = vmatprep.subr.bf16.mxu0 0
  %599 = vmatpush1.bf16.msra.mxu0 %v465
  %600 = vmatprep.subr.bf16.mxu0 0
  %601 = vmatpush1.bf16.msra.mxu0 %v466
  %602 = vmatprep.subr.bf16.mxu0 0
  %603 = vmatpush1.bf16.msra.mxu0 %v467
  %604 = vmatprep.subr.bf16.mxu0 0
  %605 = vmatpush1.bf16.msra.mxu0 %v468
  %606 = vmatprep.subr.bf16.mxu0 0
  %607 = vmatpush1.bf16.msra.mxu0 %v469
  %608 = vmatprep.subr.bf16.mxu0 0
  %609 = vmatpush1.bf16.msra.mxu0 %v470
  %610 = vmatprep.subr.bf16.mxu0 0
  %611 = vmatpush1.bf16.msra.mxu0 %v471
  %612 = vmatprep.subr.bf16.mxu0 0
  %613 = vmatpush1.bf16.msra.mxu0 %v472
  %614 = vmatprep.subr.bf16.mxu0 0
  %615 = vmatpush1.bf16.msra.mxu0 %v473
  %616 = vmatprep.subr.bf16.mxu0 0
  %617 = vmatpush1.bf16.msra.mxu0 %v474
  %618 = vmatprep.subr.bf16.mxu0 0
  %619 = vmatpush1.bf16.msra.mxu0 %v475
  %620 = vmatprep.mubr.bf16.mxu0 %v189
  %621 = vmatmul.mubr.bf16.gmra.mrb[0].mxu0 %v188
  %v622 = vpop.f32.mrb[0].mxu0
  %v623 = vadd.f32 %v162, %v622
  %v624 = vpop.f32.mrb[0].mxu0
  %v625 = vpop.f32.mrb[0].mxu0
  %v626 = vadd.f32 %v162, %v625
  %v627 = vpop.f32.mrb[0].mxu0
  %628 = vdwg.mxu0
  %629 = vmatprep.subr.bf16.mxu0 0
  %630 = vmatpush1.bf16.msra.mxu0 %v476
  %631 = vmatprep.subr.bf16.mxu0 0
  %632 = vmatpush1.bf16.msra.mxu0 %v477
  %633 = vmatprep.subr.bf16.mxu0 0
  %634 = vmatpush1.bf16.msra.mxu0 %v478
  %635 = vmatprep.subr.bf16.mxu0 0
  %636 = vmatpush1.bf16.msra.mxu0 %v479
  %637 = vmatprep.subr.bf16.mxu0 0
  %638 = vmatpush1.bf16.msra.mxu0 %v480
  %639 = vmatprep.subr.bf16.mxu0 0
  %640 = vmatpush1.bf16.msra.mxu0 %v481
  %641 = vmatprep.subr.bf16.mxu0 0
  %642 = vmatpush1.bf16.msra.mxu0 %v482
  %643 = vmatprep.subr.bf16.mxu0 0
  %644 = vmatpush1.bf16.msra.mxu0 %v483
  %645 = vmatprep.subr.bf16.mxu0 0
  %646 = vmatpush1.bf16.msra.mxu0 %v484
  %647 = vmatprep.subr.bf16.mxu0 0
  %648 = vmatpush1.bf16.msra.mxu0 %v485
  %649 = vmatprep.subr.bf16.mxu0 0
  %650 = vmatpush1.bf16.msra.mxu0 %v486
  %651 = vmatprep.subr.bf16.mxu0 0
  %652 = vmatpush1.bf16.msra.mxu0 %v487
  %653 = vmatprep.subr.bf16.mxu0 0
  %654 = vmatpush1.bf16.msra.mxu0 %v488
  %655 = vmatprep.subr.bf16.mxu0 0
  %656 = vmatpush1.bf16.msra.mxu0 %v489
  %657 = vmatprep.subr.bf16.mxu0 0
  %658 = vmatpush1.bf16.msra.mxu0 %v490
  %659 = vmatprep.subr.bf16.mxu0 0
  %660 = vmatpush1.bf16.msra.mxu0 %v491
  %661 = vmatprep.mubr.bf16.mxu0 %v191
  %662 = vmatmul.mubr.bf16.gmra.mrb[0].mxu0 %v190
  %v663 = vpop.f32.mrb[0].mxu0
  %v664 = vadd.f32 %v623, %v663
  %v665 = vpop.f32.mrb[0].mxu0
  %v666 = vpop.f32.mrb[0].mxu0
  %v667 = vadd.f32 %v626, %v666
  %v668 = vpop.f32.mrb[0].mxu0
  %669 = vdwg.mxu0
  %670 = vmatprep.subr.bf16.mxu0 0
  %671 = vmatpush1.bf16.msra.mxu0 %v492
  %672 = vmatprep.subr.bf16.mxu0 0
  %673 = vmatpush1.bf16.msra.mxu0 %v493
  %674 = vmatprep.subr.bf16.mxu0 0
  %675 = vmatpush1.bf16.msra.mxu0 %v494
  %676 = vmatprep.subr.bf16.mxu0 0
  %677 = vmatpush1.bf16.msra.mxu0 %v495
  %678 = vmatprep.subr.bf16.mxu0 0
  %679 = vmatpush1.bf16.msra.mxu0 %v496
  %680 = vmatprep.subr.bf16.mxu0 0
  %681 = vmatpush1.bf16.msra.mxu0 %v497
  %682 = vmatprep.subr.bf16.mxu0 0
  %683 = vmatpush1.bf16.msra.mxu0 %v498
  %684 = vmatprep.subr.bf16.mxu0 0
  %685 = vmatpush1.bf16.msra.mxu0 %v499
  %686 = vmatprep.subr.bf16.mxu0 0
  %687 = vmatpush1.bf16.msra.mxu0 %v500
  %688 = vmatprep.subr.bf16.mxu0 0
  %689 = vmatpush1.bf16.msra.mxu0 %v501
  %690 = vmatprep.subr.bf16.mxu0 0
  %691 = vmatpush1.bf16.msra.mxu0 %v502
  %692 = vmatprep.subr.bf16.mxu0 0
  %693 = vmatpush1.bf16.msra.mxu0 %v503
  %694 = vmatprep.subr.bf16.mxu0 0
  %695 = vmatpush1.bf16.msra.mxu0 %v504
  %696 = vmatprep.subr.bf16.mxu0 0
  %697 = vmatpush1.bf16.msra.mxu0 %v505
  %698 = vmatprep.subr.bf16.mxu0 0
  %699 = vmatpush1.bf16.msra.mxu0 %v506
  %700 = vmatprep.subr.bf16.mxu0 0
  %701 = vmatpush1.bf16.msra.mxu0 %v507
  %702 = vmatprep.mubr.bf16.mxu0 %v193
  %703 = vmatmul.mubr.bf16.gmra.mrb[0].mxu0 %v192
  %v704 = vpop.f32.mrb[0].mxu0
  %v705 = vadd.f32 %v664, %v704
  %v706 = vpop.f32.mrb[0].mxu0
  %v707 = vpop.f32.mrb[0].mxu0
  %v708 = vadd.f32 %v667, %v707
  %v709 = vpop.f32.mrb[0].mxu0
  %710 = vdwg.mxu0
  %711 = vmatprep.subr.bf16.mxu0 0
  %712 = vmatpush1.bf16.msra.mxu0 %v508
  %713 = vmatprep.subr.bf16.mxu0 0
  %714 = vmatpush1.bf16.msra.mxu0 %v509
  %715 = vmatprep.subr.bf16.mxu0 0
  %716 = vmatpush1.bf16.msra.mxu0 %v510
  %717 = vmatprep.subr.bf16.mxu0 0
  %718 = vmatpush1.bf16.msra.mxu0 %v511
  %719 = vmatprep.subr.bf16.mxu0 0
  %720 = vmatpush1.bf16.msra.mxu0 %v512
  %721 = vmatprep.subr.bf16.mxu0 0
  %722 = vmatpush1.bf16.msra.mxu0 %v513
  %723 = vmatprep.subr.bf16.mxu0 0
  %724 = vmatpush1.bf16.msra.mxu0 %v514
  %725 = vmatprep.subr.bf16.mxu0 0
  %726 = vmatpush1.bf16.msra.mxu0 %v515
  %727 = vmatprep.subr.bf16.mxu0 0
  %728 = vmatpush1.bf16.msra.mxu0 %v516
  %729 = vmatprep.subr.bf16.mxu0 0
  %730 = vmatpush1.bf16.msra.mxu0 %v517
  %731 = vmatprep.subr.bf16.mxu0 0
  %732 = vmatpush1.bf16.msra.mxu0 %v518
  %733 = vmatprep.subr.bf16.mxu0 0
  %734 = vmatpush1.bf16.msra.mxu0 %v519
  %735 = vmatprep.subr.bf16.mxu0 0
  %736 = vmatpush1.bf16.msra.mxu0 %v520
  %737 = vmatprep.subr.bf16.mxu0 0
  %738 = vmatpush1.bf16.msra.mxu0 %v521
  %739 = vmatprep.subr.bf16.mxu0 0
  %740 = vmatpush1.bf16.msra.mxu0 %v522
  %741 = vmatprep.subr.bf16.mxu0 0
  %742 = vmatpush1.bf16.msra.mxu0 %v523
  %743 = vmatprep.mubr.bf16.mxu0 %v195
  %744 = vmatmul.mubr.bf16.gmra.mrb[0].mxu0 %v194
  %v745 = vpop.f32.mrb[0].mxu0
  %v746 = vadd.f32 %v705, %v745
  %v747 = vpop.f32.mrb[0].mxu0
  %v748 = vpop.f32.mrb[0].mxu0
  %v749 = vadd.f32 %v708, %v748
  %v750 = vpop.f32.mrb[0].mxu0
  %751 = vdwg.mxu0
  %v752 = vmax.f32 %v746, 0.0
  %v753 = vmax.f32 %v749, 0.0
  %v754 = vmul.f32 %v752, %v752
  %v755 = vmul.f32 %v753, %v753
  %756 = vadd.xlane.f32.xlu0 %v754
  %v757 = vpop.xlane.xlu0 %756
  %758 = vadd.xlane.f32.xlu0 %v755
  %v759 = vpop.xlane.xlu0 %758
  %v760 = vld [vmem:[%s3] sm:$0xff]
  %v761 = vld [vmem:[%s3 + $0x8] sm:$0xff]
  %v762 = vld [vmem:[%s3 + $0x10] sm:$0xff]
  %v763 = vld [vmem:[%s3 + $0x18] sm:$0xff]
  %v764 = vld [vmem:[%s3 + $0x20] sm:$0xff]
  %v765 = vld [vmem:[%s3 + $0x28] sm:$0xff]
  %v766 = vld [vmem:[%s3 + $0x30] sm:$0xff]
  %v767 = vld [vmem:[%s3 + $0x38] sm:$0xff]
  %v768 = vld [vmem:[%s3 + $0x40] sm:$0xff]
  %v769 = vld [vmem:[%s3 + $0x48] sm:$0xff]
  %v770 = vld [vmem:[%s3 + $0x50] sm:$0xff]
  %v771 = vld [vmem:[%s3 + $0x58] sm:$0xff]
  %v772 = vld [vmem:[%s3 + $0x60] sm:$0xff]
  %v773 = vld [vmem:[%s3 + $0x68] sm:$0xff]
  %v774 = vld [vmem:[%s3 + $0x70] sm:$0xff]
  %v775 = vld [vmem:[%s3 + $0x78] sm:$0xff]
  %776 = vmatprep.subr.mxu0 0.0
  %777 = vmatpush1.msra.mxu0 %v760
  %778 = vmatprep.subr.mxu0 0.0
  %779 = vmatpush1.msra.mxu0 %v761
  %780 = vmatprep.subr.mxu0 0.0
  %781 = vmatpush1.msra.mxu0 %v762
  %782 = vmatprep.subr.mxu0 0.0
  %783 = vmatpush1.msra.mxu0 %v763
  %784 = vmatprep.subr.mxu0 0.0
  %785 = vmatpush1.msra.mxu0 %v764
  %786 = vmatprep.subr.mxu0 0.0
  %787 = vmatpush1.msra.mxu0 %v765
  %788 = vmatprep.subr.mxu0 0.0
  %789 = vmatpush1.msra.mxu0 %v766
  %790 = vmatprep.subr.mxu0 0.0
  %791 = vmatpush1.msra.mxu0 %v767
  %792 = vmatprep.subr.mxu0 0.0
  %793 = vmatpush1.msra.mxu0 %v768
  %794 = vmatprep.subr.mxu0 0.0
  %795 = vmatpush1.msra.mxu0 %v769
  %796 = vmatprep.subr.mxu0 0.0
  %797 = vmatpush1.msra.mxu0 %v770
  %798 = vmatprep.subr.mxu0 0.0
  %799 = vmatpush1.msra.mxu0 %v771
  %800 = vmatprep.subr.mxu0 0.0
  %801 = vmatpush1.msra.mxu0 %v772
  %802 = vmatprep.subr.mxu0 0.0
  %803 = vmatpush1.msra.mxu0 %v773
  %804 = vmatprep.subr.mxu0 0.0
  %805 = vmatpush1.msra.mxu0 %v774
  %806 = vmatprep.subr.mxu0 0.0
  %807 = vmatpush1.msra.mxu0 %v775
  %808 = vmatprep.subr.mxu0 0.0
  %809 = vmatpush1.msra.mxu0 0.0
  %810 = vmatprep.subr.mxu0 0.0
  %811 = vmatpush1.msra.mxu0 0.0
  %812 = vmatprep.subr.mxu0 0.0
  %813 = vmatpush1.msra.mxu0 0.0
  %814 = vmatprep.subr.mxu0 0.0
  %815 = vmatpush1.msra.mxu0 0.0
  %816 = vmatprep.subr.mxu0 0.0
  %817 = vmatpush1.msra.mxu0 0.0
  %818 = vmatprep.subr.mxu0 0.0
  %819 = vmatpush1.msra.mxu0 0.0
  %820 = vmatprep.subr.mxu0 0.0
  %821 = vmatpush1.msra.mxu0 0.0
  %822 = vmatprep.subr.mxu0 0.0
  %823 = vmatpush1.msra.mxu0 0.0
  %824 = vmatprep.subr.mxu0 0.0
  %825 = vmatpush1.msra.mxu0 0.0
  %826 = vmatprep.subr.mxu0 0.0
  %827 = vmatpush1.msra.mxu0 0.0
  %828 = vmatprep.subr.mxu0 0.0
  %829 = vmatpush1.msra.mxu0 0.0
  %830 = vmatprep.subr.mxu0 0.0
  %831 = vmatpush1.msra.mxu0 0.0
  %832 = vmatprep.subr.mxu0 0.0
  %833 = vmatpush1.msra.mxu0 0.0
  %834 = vmatprep.subr.mxu0 0.0
  %835 = vmatpush1.msra.mxu0 0.0
  %836 = vmatprep.subr.mxu0 0.0
  %837 = vmatpush1.msra.mxu0 0.0
  %838 = vmatprep.subr.mxu0 0.0
  %839 = vmatpush1.msra.mxu0 0.0
  %840 = vmatprep.mubr.f32.mxu0 0.0
  %841 = vmatmul.mubr.f32.gmra.mrb[0].mxu0 %v752
  %v842 = vpop.f32.mrb[0].mxu0
  %v843 = vadd.f32 0.0, %v842
  %v844 = vpop.f32.mrb[0].mxu0
  %845 = vmatprep.mubr.f32.mxu0 0.0
  %846 = vmatmul.mubr.f32.gmra.mrb[0].mxu0 %v753
  %v847 = vpop.f32.mrb[0].mxu0
  %v848 = vadd.f32 0.0, %v847
  %v849 = vpop.f32.mrb[0].mxu0
  %850 = vdwg.mxu0
  %v851 = vld [vmem:[%s4] sm:$0x1]
  %v853 = vlaneseq
  %v854 = vshrl.u32 %v853, 7
  %v855 = vsub.s32 0, %v854
  %v856 = vrot.slane %v851, %v855
  %v858 = vadd.f32 %v757, %v856
  %v859 = vadd.f32 %v759, %v856
  %v860 = vmul.f32 %v843, 2.0
  %v861 = vmul.f32 %v848, 2.0
  %v862 = vsub.f32 %v858, %v860
  %v863 = vsub.f32 %v859, %v861
  %v864 = vmax.f32 %v862, 0.0
  %v865 = vmax.f32 %v863, 0.0
  %v866 = vrsqrt.pop %v864
  %v867 = vmul.f32 %v864, %v866
  %vm868 = vcmp.eq.f32.partialorder %v864, inf
  %v869 = vsel %vm868, %v864, %v867
  %vm870 = vcmp.eq.f32.partialorder %v864, 0.0
  %v871 = vand.u32 %v864, 2147483648
  %v872 = vsel %vm870, %v871, %v869
  %v873 = vrsqrt.pop %v865
  %v874 = vmul.f32 %v865, %v873
  %vm875 = vcmp.eq.f32.partialorder %v865, inf
  %v876 = vsel %vm875, %v865, %v874
  %vm877 = vcmp.eq.f32.partialorder %v865, 0.0
  %v878 = vand.u32 %v865, 2147483648
  %v879 = vsel %vm877, %v878, %v876
  %v880 = vsub.f32 0.0, %v872
  %v881 = vsub.f32 0.0, %v879
  %882 = vst [vmem:[%s5] sm:$0xff] %v880
  %883 = vst [vmem:[%s5 + $0x8] sm:$0xff] %v881
  // Predicated region
  $region22: #{_forward_impl.3} parent=0 // pred_check
    _
  $region23: #{_forward_impl.3} parent=0 // pred_check_branch
    %885 = sbr.rel (0) target = $region25
  $region24: #{_forward_impl.3} parent=0 // pred_region
    _
  $region25: #{_forward_impl.3} parent=0 // pred_fallthru
    _
  // Predicated region
  $region26: #{_forward_impl.3} parent=0 // pred_check
    _
  $region27: #{_forward_impl.3} parent=0 // pred_check_branch
    %887 = sbr.rel (0) target = $region29
  $region28: #{_forward_impl.3} parent=0 // pred_region
    _
  $region29: #{_forward_impl.3} parent=0 // pred_fallthru
    _

// kernel: _forward_impl.2
$region0: #{_forward_impl.2}
  #allocation0 [shape = 'u32[]', space=smem, size = 0x4, offset = 0x4, fixed_abs, tag = 'smem constant byte address 0x4 - core index']
  #allocation1 [shape = 'u32[144,128]{1,0:T(1,128)}', space=vmem, size = 0x12000, scoped, tag = 'internal scratch']
  %s0 = inlined_call_operand.vmem [shape: bf16[16,1024], index: 0, kind: input, shape index: {}]
  %s1 = inlined_call_operand.vmem [shape: bf16[1024,128], index: 1, kind: input, shape index: {}]
  %s2 = inlined_call_operand.vmem [shape: f32[1,128], index: 2, kind: input, shape index: {}]
  %s3 = inlined_call_operand.vmem [shape: f32[128,16], index: 3, kind: input, shape index: {}]
  %s4 = inlined_call_operand.vmem [shape: f32[128,128], index: 4, kind: output, shape index: {0}]
  %s5 = inlined_call_operand.vmem [shape: f32[1,128], index: 5, kind: output, shape index: {1}]
  %6 = xla_tuple %s4, %s5
  %s7 = sld [smem:[#allocation0]]
  $region34: #{_forward_impl.2} parent=0
    _
  %s9 = ssub.s32 1, %s7
  %s10 = scalar_select 0, %s9, %s7
  // Predicated region
  $region2: #{_forward_impl.2} parent=0 // pred_check
    _
  $region3: #{_forward_impl.2} parent=0 // pred_check_branch
    %12 = sbr.rel (0) target = $region5
  $region4: #{_forward_impl.2} parent=0 // pred_region
    _
  $region5: #{_forward_impl.2} parent=0 // pred_fallthru
    _
  // Predicated region
  $region6: #{_forward_impl.2} parent=0 // pred_check
    _
  $region7: #{_forward_impl.2} parent=0 // pred_check_branch
    %14 = sbr.rel (0) target = $region9
  $region8: #{_forward_impl.2} parent=0 // pred_region
    _
  $region9: #{_forward_impl.2} parent=0 // pred_fallthru
    _
  // Predicated region
  $region10: #{_forward_impl.2} parent=0 // pred_check
    _
  $region11: #{_forward_impl.2} parent=0 // pred_check_branch
    %16 = sbr.rel (0) target = $region13
  $region12: #{_forward_impl.2} parent=0 // pred_region
    _
  $region13: #{_forward_impl.2} parent=0 // pred_fallthru
    _
  // Predicated region
  $region14: #{_forward_impl.2} parent=0 // pred_check
    _
  $region15: #{_forward_impl.2} parent=0 // pred_check_branch
    %18 = sbr.rel (0) target = $region17
  $region16: #{_forward_impl.2} parent=0 // pred_region
    _
  $region17: #{_forward_impl.2} parent=0 // pred_fallthru
    _
  %v20 = vld [vmem:[%s0] sm:$0xff]
  %v21 = vld [vmem:[%s0 + $0x8] sm:$0xff]
  %v22 = vld [vmem:[%s0 + $0x10] sm:$0xff]
  %v23 = vld [vmem:[%s0 + $0x18] sm:$0xff]
  %v24 = vld [vmem:[%s0 + $0x20] sm:$0xff]
  %v25 = vld [vmem:[%s0 + $0x28] sm:$0xff]
  %v26 = vld [vmem:[%s0 + $0x30] sm:$0xff]
  %v27 = vld [vmem:[%s0 + $0x38] sm:$0xff]
  %v28 = vld [vmem:[%s1] sm:$0xf]
  %v29 = vld [vmem:[%s1 + $0x4] sm:$0xf]
  %v30 = vld [vmem:[%s1 + $0x8] sm:$0xf]
  %v31 = vld [vmem:[%s1 + $0xc] sm:$0xf]
  %v32 = vld [vmem:[%s1 + $0x10] sm:$0xf]
  %v33 = vld [vmem:[%s1 + $0x14] sm:$0xf]
  %v34 = vld [vmem:[%s1 + $0x18] sm:$0xf]
  %v35 = vld [vmem:[%s1 + $0x1c] sm:$0xf]
  %v36 = vld [vmem:[%s1 + $0x20] sm:$0xf]
  %v37 = vld [vmem:[%s1 + $0x24] sm:$0xf]
  %v38 = vld [vmem:[%s1 + $0x28] sm:$0xf]
  %v39 = vld [vmem:[%s1 + $0x2c] sm:$0xf]
  %v40 = vld [vmem:[%s1 + $0x30] sm:$0xf]
  %v41 = vld [vmem:[%s1 + $0x34] sm:$0xf]
  %v42 = vld [vmem:[%s1 + $0x38] sm:$0xf]
  %v43 = vld [vmem:[%s1 + $0x3c] sm:$0xf]
  %v44 = vld [vmem:[%s1 + $0x40] sm:$0xf]
  %v45 = vld [vmem:[%s1 + $0x44] sm:$0xf]
  %v46 = vld [vmem:[%s1 + $0x48] sm:$0xf]
  %v47 = vld [vmem:[%s1 + $0x4c] sm:$0xf]
  %v48 = vld [vmem:[%s1 + $0x50] sm:$0xf]
  %v49 = vld [vmem:[%s1 + $0x54] sm:$0xf]
  %v50 = vld [vmem:[%s1 + $0x58] sm:$0xf]
  %v51 = vld [vmem:[%s1 + $0x5c] sm:$0xf]
  %v52 = vld [vmem:[%s1 + $0x60] sm:$0xf]
  %v53 = vld [vmem:[%s1 + $0x64] sm:$0xf]
  %v54 = vld [vmem:[%s1 + $0x68] sm:$0xf]
  %v55 = vld [vmem:[%s1 + $0x6c] sm:$0xf]
  %v56 = vld [vmem:[%s1 + $0x70] sm:$0xf]
  %v57 = vld [vmem:[%s1 + $0x74] sm:$0xf]
  %v58 = vld [vmem:[%s1 + $0x78] sm:$0xf]
  %v59 = vld [vmem:[%s1 + $0x7c] sm:$0xf]
  %v60 = vld [vmem:[%s1 + $0x80] sm:$0xf]
  %v61 = vld [vmem:[%s1 + $0x84] sm:$0xf]
  %v62 = vld [vmem:[%s1 + $0x88] sm:$0xf]
  %v63 = vld [vmem:[%s1 + $0x8c] sm:$0xf]
  %v64 = vld [vmem:[%s1 + $0x90] sm:$0xf]
  %v65 = vld [vmem:[%s1 + $0x94] sm:$0xf]
  %v66 = vld [vmem:[%s1 + $0x98] sm:$0xf]
  %v67 = vld [vmem:[%s1 + $0x9c] sm:$0xf]
  %v68 = vld [vmem:[%s1 + $0xa0] sm:$0xf]
  %v69 = vld [vmem:[%s1 + $0xa4] sm:$0xf]
  %v70 = vld [vmem:[%s1 + $0xa8] sm:$0xf]
  %v71 = vld [vmem:[%s1 + $0xac] sm:$0xf]
  %v72 = vld [vmem:[%s1 + $0xb0] sm:$0xf]
  %v73 = vld [vmem:[%s1 + $0xb4] sm:$0xf]
  %v74 = vld [vmem:[%s1 + $0xb8] sm:$0xf]
  %v75 = vld [vmem:[%s1 + $0xbc] sm:$0xf]
  %v76 = vld [vmem:[%s1 + $0xc0] sm:$0xf]
  %v77 = vld [vmem:[%s1 + $0xc4] sm:$0xf]
  %v78 = vld [vmem:[%s1 + $0xc8] sm:$0xf]
  %v79 = vld [vmem:[%s1 + $0xcc] sm:$0xf]
  %v80 = vld [vmem:[%s1 + $0xd0] sm:$0xf]
  %v81 = vld [vmem:[%s1 + $0xd4] sm:$0xf]
  %v82 = vld [vmem:[%s1 + $0xd8] sm:$0xf]
  %v83 = vld [vmem:[%s1 + $0xdc] sm:$0xf]
  %v84 = vld [vmem:[%s1 + $0xe0] sm:$0xf]
  %v85 = vld [vmem:[%s1 + $0xe4] sm:$0xf]
  %v86 = vld [vmem:[%s1 + $0xe8] sm:$0xf]
  %v87 = vld [vmem:[%s1 + $0xec] sm:$0xf]
  %v88 = vld [vmem:[%s1 + $0xf0] sm:$0xf]
  %v89 = vld [vmem:[%s1 + $0xf4] sm:$0xf]
  %v90 = vld [vmem:[%s1 + $0xf8] sm:$0xf]
  %v91 = vld [vmem:[%s1 + $0xfc] sm:$0xf]
  %v92 = vld [vmem:[%s1 + $0x100] sm:$0xf]
  %v93 = vld [vmem:[%s1 + $0x104] sm:$0xf]
  %v94 = vld [vmem:[%s1 + $0x108] sm:$0xf]
  %v95 = vld [vmem:[%s1 + $0x10c] sm:$0xf]
  %v96 = vld [vmem:[%s1 + $0x110] sm:$0xf]
  %v97 = vld [vmem:[%s1 + $0x114] sm:$0xf]
  %v98 = vld [vmem:[%s1 + $0x118] sm:$0xf]
  %v99 = vld [vmem:[%s1 + $0x11c] sm:$0xf]
  %v100 = vld [vmem:[%s1 + $0x120] sm:$0xf]
  %v101 = vld [vmem:[%s1 + $0x124] sm:$0xf]
  %v102 = vld [vmem:[%s1 + $0x128] sm:$0xf]
  %v103 = vld [vmem:[%s1 + $0x12c] sm:$0xf]
  %v104 = vld [vmem:[%s1 + $0x130] sm:$0xf]
  %v105 = vld [vmem:[%s1 + $0x134] sm:$0xf]
  %v106 = vld [vmem:[%s1 + $0x138] sm:$0xf]
  %v107 = vld [vmem:[%s1 + $0x13c] sm:$0xf]
  %v108 = vld [vmem:[%s1 + $0x140] sm:$0xf]
  %v109 = vld [vmem:[%s1 + $0x144] sm:$0xf]
  %v110 = vld [vmem:[%s1 + $0x148] sm:$0xf]
  %v111 = vld [vmem:[%s1 + $0x14c] sm:$0xf]
  %v112 = vld [vmem:[%s1 + $0x150] sm:$0xf]
  %v113 = vld [vmem:[%s1 + $0x154] sm:$0xf]
  %v114 = vld [vmem:[%s1 + $0x158] sm:$0xf]
  %v115 = vld [vmem:[%s1 + $0x15c] sm:$0xf]
  %v116 = vld [vmem:[%s1 + $0x160] sm:$0xf]
  %v117 = vld [vmem:[%s1 + $0x164] sm:$0xf]
  %v118 = vld [vmem:[%s1 + $0x168] sm:$0xf]
  %v119 = vld [vmem:[%s1 + $0x16c] sm:$0xf]
  %v120 = vld [vmem:[%s1 + $0x170] sm:$0xf]
  %v121 = vld [vmem:[%s1 + $0x174] sm:$0xf]
  %v122 = vld [vmem:[%s1 + $0x178] sm:$0xf]
  %v123 = vld [vmem:[%s1 + $0x17c] sm:$0xf]
  %v124 = vld [vmem:[%s1 + $0x180] sm:$0xf]
  %v125 = vld [vmem:[%s1 + $0x184] sm:$0xf]
  %v126 = vld [vmem:[%s1 + $0x188] sm:$0xf]
  %v127 = vld [vmem:[%s1 + $0x18c] sm:$0xf]
  %v128 = vld [vmem:[%s1 + $0x190] sm:$0xf]
  %v129 = vld [vmem:[%s1 + $0x194] sm:$0xf]
  %v130 = vld [vmem:[%s1 + $0x198] sm:$0xf]
  %v131 = vld [vmem:[%s1 + $0x19c] sm:$0xf]
  %v132 = vld [vmem:[%s1 + $0x1a0] sm:$0xf]
  %v133 = vld [vmem:[%s1 + $0x1a4] sm:$0xf]
  %v134 = vld [vmem:[%s1 + $0x1a8] sm:$0xf]
  %v135 = vld [vmem:[%s1 + $0x1ac] sm:$0xf]
  %v136 = vld [vmem:[%s1 + $0x1b0] sm:$0xf]
  %v137 = vld [vmem:[%s1 + $0x1b4] sm:$0xf]
  %v138 = vld [vmem:[%s1 + $0x1b8] sm:$0xf]
  %v139 = vld [vmem:[%s1 + $0x1bc] sm:$0xf]
  %v140 = vld [vmem:[%s1 + $0x1c0] sm:$0xf]
  %v141 = vld [vmem:[%s1 + $0x1c4] sm:$0xf]
  %v142 = vld [vmem:[%s1 + $0x1c8] sm:$0xf]
  %v143 = vld [vmem:[%s1 + $0x1cc] sm:$0xf]
  %v144 = vld [vmem:[%s1 + $0x1d0] sm:$0xf]
  %v145 = vld [vmem:[%s1 + $0x1d4] sm:$0xf]
  %v146 = vld [vmem:[%s1 + $0x1d8] sm:$0xf]
  %v147 = vld [vmem:[%s1 + $0x1dc] sm:$0xf]
  %v148 = vld [vmem:[%s1 + $0x1e0] sm:$0xf]
  %v149 = vld [vmem:[%s1 + $0x1e4] sm:$0xf]
  %v150 = vld [vmem:[%s1 + $0x1e8] sm:$0xf]
  %v151 = vld [vmem:[%s1 + $0x1ec] sm:$0xf]
  %v152 = vld [vmem:[%s1 + $0x1f0] sm:$0xf]
  %v153 = vld [vmem:[%s1 + $0x1f4] sm:$0xf]
  %v154 = vld [vmem:[%s1 + $0x1f8] sm:$0xf]
  %v155 = vld [vmem:[%s1 + $0x1fc] sm:$0xf]
  %v156 = vld [vmem:[%s2] sm:$0x1]
  %v158 = vlaneseq
  %v159 = vshrl.u32 %v158, 7
  %v160 = vsub.s32 0, %v159
  %v161 = vrot.slane %v156, %v160
  %v171 = vunpack.c.l.b16 %v20
  %v172 = vunpack.c.h.b16 %v20
  %v173 = vunpack.c.l.b16 %v21
  %v174 = vunpack.c.h.b16 %v21
  %v175 = vunpack.c.l.b16 %v22
  %v176 = vunpack.c.h.b16 %v22
  %v177 = vunpack.c.l.b16 %v23
  %v178 = vunpack.c.h.b16 %v23
  %v179 = vunpack.c.l.b16 %v24
  %v180 = vunpack.c.h.b16 %v24
  %v181 = vunpack.c.l.b16 %v25
  %v182 = vunpack.c.h.b16 %v25
  %v183 = vunpack.c.l.b16 %v26
  %v184 = vunpack.c.h.b16 %v26
  %v185 = vunpack.c.l.b16 %v27
  %v186 = vunpack.c.h.b16 %v27
  %v187 = vpack.c.b16 %v179, %v171
  %v188 = vpack.c.b16 %v180, %v172
  %v189 = vpack.c.b16 %v181, %v173
  %v190 = vpack.c.b16 %v182, %v174
  %v191 = vpack.c.b16 %v183, %v175
  %v192 = vpack.c.b16 %v184, %v176
  %v193 = vpack.c.b16 %v185, %v177
  %v194 = vpack.c.b16 %v186, %v178
  %v331 = vunpack.c.l.b16 %v28
  %v332 = vunpack.c.l.b16 %v29
  %v333 = vunpack.c.l.b16 %v30
  %v334 = vunpack.c.l.b16 %v31
  %v335 = vunpack.c.l.b16 %v32
  %v336 = vunpack.c.l.b16 %v33
  %v337 = vunpack.c.l.b16 %v34
  %v338 = vunpack.c.l.b16 %v35
  %v339 = vunpack.c.l.b16 %v36
  %v340 = vunpack.c.l.b16 %v37
  %v341 = vunpack.c.l.b16 %v38
  %v342 = vunpack.c.l.b16 %v39
  %v343 = vunpack.c.l.b16 %v40
  %v344 = vunpack.c.l.b16 %v41
  %v345 = vunpack.c.l.b16 %v42
  %v346 = vunpack.c.l.b16 %v43
  %v347 = vunpack.c.l.b16 %v44
  %v348 = vunpack.c.l.b16 %v45
  %v349 = vunpack.c.l.b16 %v46
  %v350 = vunpack.c.l.b16 %v47
  %v351 = vunpack.c.l.b16 %v48
  %v352 = vunpack.c.l.b16 %v49
  %v353 = vunpack.c.l.b16 %v50
  %v354 = vunpack.c.l.b16 %v51
  %v355 = vunpack.c.l.b16 %v52
  %v356 = vunpack.c.l.b16 %v53
  %v357 = vunpack.c.l.b16 %v54
  %v358 = vunpack.c.l.b16 %v55
  %v359 = vunpack.c.l.b16 %v56
  %v360 = vunpack.c.l.b16 %v57
  %v361 = vunpack.c.l.b16 %v58
  %v362 = vunpack.c.l.b16 %v59
  %v363 = vunpack.c.l.b16 %v60
  %v364 = vunpack.c.l.b16 %v61
  %v365 = vunpack.c.l.b16 %v62
  %v366 = vunpack.c.l.b16 %v63
  %v367 = vunpack.c.l.b16 %v64
  %v368 = vunpack.c.l.b16 %v65
  %v369 = vunpack.c.l.b16 %v66
  %v370 = vunpack.c.l.b16 %v67
  %v371 = vunpack.c.l.b16 %v68
  %v372 = vunpack.c.l.b16 %v69
  %v373 = vunpack.c.l.b16 %v70
  %v374 = vunpack.c.l.b16 %v71
  %v375 = vunpack.c.l.b16 %v72
  %v376 = vunpack.c.l.b16 %v73
  %v377 = vunpack.c.l.b16 %v74
  %v378 = vunpack.c.l.b16 %v75
  %v379 = vunpack.c.l.b16 %v76
  %v380 = vunpack.c.l.b16 %v77
  %v381 = vunpack.c.l.b16 %v78
  %v382 = vunpack.c.l.b16 %v79
  %v383 = vunpack.c.l.b16 %v80
  %v384 = vunpack.c.l.b16 %v81
  %v385 = vunpack.c.l.b16 %v82
  %v386 = vunpack.c.l.b16 %v83
  %v387 = vunpack.c.l.b16 %v84
  %v388 = vunpack.c.l.b16 %v85
  %v389 = vunpack.c.l.b16 %v86
  %v390 = vunpack.c.l.b16 %v87
  %v391 = vunpack.c.l.b16 %v88
  %v392 = vunpack.c.l.b16 %v89
  %v393 = vunpack.c.l.b16 %v90
  %v394 = vunpack.c.l.b16 %v91
  %v395 = vunpack.c.l.b16 %v92
  %v396 = vunpack.c.l.b16 %v93
  %v397 = vunpack.c.l.b16 %v94
  %v398 = vunpack.c.l.b16 %v95
  %v399 = vunpack.c.l.b16 %v96
  %v400 = vunpack.c.l.b16 %v97
  %v401 = vunpack.c.l.b16 %v98
  %v402 = vunpack.c.l.b16 %v99
  %v403 = vunpack.c.l.b16 %v100
  %v404 = vunpack.c.l.b16 %v101
  %v405 = vunpack.c.l.b16 %v102
  %v406 = vunpack.c.l.b16 %v103
  %v407 = vunpack.c.l.b16 %v104
  %v408 = vunpack.c.l.b16 %v105
  %v409 = vunpack.c.l.b16 %v106
  %v410 = vunpack.c.l.b16 %v107
  %v411 = vunpack.c.l.b16 %v108
  %v412 = vunpack.c.l.b16 %v109
  %v413 = vunpack.c.l.b16 %v110
  %v414 = vunpack.c.l.b16 %v111
  %v415 = vunpack.c.l.b16 %v112
  %v416 = vunpack.c.l.b16 %v113
  %v417 = vunpack.c.l.b16 %v114
  %v418 = vunpack.c.l.b16 %v115
  %v419 = vunpack.c.l.b16 %v116
  %v420 = vunpack.c.l.b16 %v117
  %v421 = vunpack.c.l.b16 %v118
  %v422 = vunpack.c.l.b16 %v119
  %v423 = vunpack.c.l.b16 %v120
  %v424 = vunpack.c.l.b16 %v121
  %v425 = vunpack.c.l.b16 %v122
  %v426 = vunpack.c.l.b16 %v123
  %v427 = vunpack.c.l.b16 %v124
  %v428 = vunpack.c.l.b16 %v125
  %v429 = vunpack.c.l.b16 %v126
  %v430 = vunpack.c.l.b16 %v127
  %v431 = vunpack.c.l.b16 %v128
  %v432 = vunpack.c.l.b16 %v129
  %v433 = vunpack.c.l.b16 %v130
  %v434 = vunpack.c.l.b16 %v131
  %v435 = vunpack.c.l.b16 %v132
  %v436 = vunpack.c.l.b16 %v133
  %v437 = vunpack.c.l.b16 %v134
  %v438 = vunpack.c.l.b16 %v135
  %v439 = vunpack.c.l.b16 %v136
  %v440 = vunpack.c.l.b16 %v137
  %v441 = vunpack.c.l.b16 %v138
  %v442 = vunpack.c.l.b16 %v139
  %v443 = vunpack.c.l.b16 %v140
  %v444 = vunpack.c.l.b16 %v141
  %v445 = vunpack.c.l.b16 %v142
  %v446 = vunpack.c.l.b16 %v143
  %v447 = vunpack.c.l.b16 %v144
  %v448 = vunpack.c.l.b16 %v145
  %v449 = vunpack.c.l.b16 %v146
  %v450 = vunpack.c.l.b16 %v147
  %v451 = vunpack.c.l.b16 %v148
  %v452 = vunpack.c.l.b16 %v149
  %v453 = vunpack.c.l.b16 %v150
  %v454 = vunpack.c.l.b16 %v151
  %v455 = vunpack.c.l.b16 %v152
  %v456 = vunpack.c.l.b16 %v153
  %v457 = vunpack.c.l.b16 %v154
  %v458 = vunpack.c.l.b16 %v155
  %v459 = vpack.c.b16 %v332, %v331
  %v460 = vpack.c.b16 %v334, %v333
  %v461 = vpack.c.b16 %v336, %v335
  %v462 = vpack.c.b16 %v338, %v337
  %v463 = vpack.c.b16 %v340, %v339
  %v464 = vpack.c.b16 %v342, %v341
  %v465 = vpack.c.b16 %v344, %v343
  %v466 = vpack.c.b16 %v346, %v345
  %v467 = vpack.c.b16 %v348, %v347
  %v468 = vpack.c.b16 %v350, %v349
  %v469 = vpack.c.b16 %v352, %v351
  %v470 = vpack.c.b16 %v354, %v353
  %v471 = vpack.c.b16 %v356, %v355
  %v472 = vpack.c.b16 %v358, %v357
  %v473 = vpack.c.b16 %v360, %v359
  %v474 = vpack.c.b16 %v362, %v361
  %v475 = vpack.c.b16 %v364, %v363
  %v476 = vpack.c.b16 %v366, %v365
  %v477 = vpack.c.b16 %v368, %v367
  %v478 = vpack.c.b16 %v370, %v369
  %v479 = vpack.c.b16 %v372, %v371
  %v480 = vpack.c.b16 %v374, %v373
  %v481 = vpack.c.b16 %v376, %v375
  %v482 = vpack.c.b16 %v378, %v377
  %v483 = vpack.c.b16 %v380, %v379
  %v484 = vpack.c.b16 %v382, %v381
  %v485 = vpack.c.b16 %v384, %v383
  %v486 = vpack.c.b16 %v386, %v385
  %v487 = vpack.c.b16 %v388, %v387
  %v488 = vpack.c.b16 %v390, %v389
  %v489 = vpack.c.b16 %v392, %v391
  %v490 = vpack.c.b16 %v394, %v393
  %v491 = vpack.c.b16 %v396, %v395
  %v492 = vpack.c.b16 %v398, %v397
  %v493 = vpack.c.b16 %v400, %v399
  %v494 = vpack.c.b16 %v402, %v401
  %v495 = vpack.c.b16 %v404, %v403
  %v496 = vpack.c.b16 %v406, %v405
  %v497 = vpack.c.b16 %v408, %v407
  %v498 = vpack.c.b16 %v410, %v409
  %v499 = vpack.c.b16 %v412, %v411
  %v500 = vpack.c.b16 %v414, %v413
  %v501 = vpack.c.b16 %v416, %v415
  %v502 = vpack.c.b16 %v418, %v417
  %v503 = vpack.c.b16 %v420, %v419
  %v504 = vpack.c.b16 %v422, %v421
  %v505 = vpack.c.b16 %v424, %v423
  %v506 = vpack.c.b16 %v426, %v425
  %v507 = vpack.c.b16 %v428, %v427
  %v508 = vpack.c.b16 %v430, %v429
  %v509 = vpack.c.b16 %v432, %v431
  %v510 = vpack.c.b16 %v434, %v433
  %v511 = vpack.c.b16 %v436, %v435
  %v512 = vpack.c.b16 %v438, %v437
  %v513 = vpack.c.b16 %v440, %v439
  %v514 = vpack.c.b16 %v442, %v441
  %v515 = vpack.c.b16 %v444, %v443
  %v516 = vpack.c.b16 %v446, %v445
  %v517 = vpack.c.b16 %v448, %v447
  %v518 = vpack.c.b16 %v450, %v449
  %v519 = vpack.c.b16 %v452, %v451
  %v520 = vpack.c.b16 %v454, %v453
  %v521 = vpack.c.b16 %v456, %v455
  %v522 = vpack.c.b16 %v458, %v457
  %587 = vmatprep.subr.bf16.mxu0 0
  %588 = vmatpush1.bf16.msra.mxu0 %v459
  %589 = vmatprep.subr.bf16.mxu0 0
  %590 = vmatpush1.bf16.msra.mxu0 %v460
  %591 = vmatprep.subr.bf16.mxu0 0
  %592 = vmatpush1.bf16.msra.mxu0 %v461
  %593 = vmatprep.subr.bf16.mxu0 0
  %594 = vmatpush1.bf16.msra.mxu0 %v462
  %595 = vmatprep.subr.bf16.mxu0 0
  %596 = vmatpush1.bf16.msra.mxu0 %v463
  %597 = vmatprep.subr.bf16.mxu0 0
  %598 = vmatpush1.bf16.msra.mxu0 %v464
  %599 = vmatprep.subr.bf16.mxu0 0
  %600 = vmatpush1.bf16.msra.mxu0 %v465
  %601 = vmatprep.subr.bf16.mxu0 0
  %602 = vmatpush1.bf16.msra.mxu0 %v466
  %603 = vmatprep.subr.bf16.mxu0 0
  %604 = vmatpush1.bf16.msra.mxu0 %v467
  %605 = vmatprep.subr.bf16.mxu0 0
  %606 = vmatpush1.bf16.msra.mxu0 %v468
  %607 = vmatprep.subr.bf16.mxu0 0
  %608 = vmatpush1.bf16.msra.mxu0 %v469
  %609 = vmatprep.subr.bf16.mxu0 0
  %610 = vmatpush1.bf16.msra.mxu0 %v470
  %611 = vmatprep.subr.bf16.mxu0 0
  %612 = vmatpush1.bf16.msra.mxu0 %v471
  %613 = vmatprep.subr.bf16.mxu0 0
  %614 = vmatpush1.bf16.msra.mxu0 %v472
  %615 = vmatprep.subr.bf16.mxu0 0
  %616 = vmatpush1.bf16.msra.mxu0 %v473
  %617 = vmatprep.subr.bf16.mxu0 0
  %618 = vmatpush1.bf16.msra.mxu0 %v474
  %619 = vmatprep.mubr.bf16.mxu0 %v188
  %620 = vmatmul.mubr.bf16.gmra.mrb[0].mxu0 %v187
  %v621 = vpop.f32.mrb[0].mxu0
  %v622 = vadd.f32 %v161, %v621
  %v623 = vpop.f32.mrb[0].mxu0
  %v624 = vpop.f32.mrb[0].mxu0
  %v625 = vadd.f32 %v161, %v624
  %v626 = vpop.f32.mrb[0].mxu0
  %627 = vdwg.mxu0
  %628 = vmatprep.subr.bf16.mxu0 0
  %629 = vmatpush1.bf16.msra.mxu0 %v475
  %630 = vmatprep.subr.bf16.mxu0 0
  %631 = vmatpush1.bf16.msra.mxu0 %v476
  %632 = vmatprep.subr.bf16.mxu0 0
  %633 = vmatpush1.bf16.msra.mxu0 %v477
  %634 = vmatprep.subr.bf16.mxu0 0
  %635 = vmatpush1.bf16.msra.mxu0 %v478
  %636 = vmatprep.subr.bf16.mxu0 0
  %637 = vmatpush1.bf16.msra.mxu0 %v479
  %638 = vmatprep.subr.bf16.mxu0 0
  %639 = vmatpush1.bf16.msra.mxu0 %v480
  %640 = vmatprep.subr.bf16.mxu0 0
  %641 = vmatpush1.bf16.msra.mxu0 %v481
  %642 = vmatprep.subr.bf16.mxu0 0
  %643 = vmatpush1.bf16.msra.mxu0 %v482
  %644 = vmatprep.subr.bf16.mxu0 0
  %645 = vmatpush1.bf16.msra.mxu0 %v483
  %646 = vmatprep.subr.bf16.mxu0 0
  %647 = vmatpush1.bf16.msra.mxu0 %v484
  %648 = vmatprep.subr.bf16.mxu0 0
  %649 = vmatpush1.bf16.msra.mxu0 %v485
  %650 = vmatprep.subr.bf16.mxu0 0
  %651 = vmatpush1.bf16.msra.mxu0 %v486
  %652 = vmatprep.subr.bf16.mxu0 0
  %653 = vmatpush1.bf16.msra.mxu0 %v487
  %654 = vmatprep.subr.bf16.mxu0 0
  %655 = vmatpush1.bf16.msra.mxu0 %v488
  %656 = vmatprep.subr.bf16.mxu0 0
  %657 = vmatpush1.bf16.msra.mxu0 %v489
  %658 = vmatprep.subr.bf16.mxu0 0
  %659 = vmatpush1.bf16.msra.mxu0 %v490
  %660 = vmatprep.mubr.bf16.mxu0 %v190
  %661 = vmatmul.mubr.bf16.gmra.mrb[0].mxu0 %v189
  %v662 = vpop.f32.mrb[0].mxu0
  %v663 = vadd.f32 %v622, %v662
  %v664 = vpop.f32.mrb[0].mxu0
  %v665 = vpop.f32.mrb[0].mxu0
  %v666 = vadd.f32 %v625, %v665
  %v667 = vpop.f32.mrb[0].mxu0
  %668 = vdwg.mxu0
  %669 = vmatprep.subr.bf16.mxu0 0
  %670 = vmatpush1.bf16.msra.mxu0 %v491
  %671 = vmatprep.subr.bf16.mxu0 0
  %672 = vmatpush1.bf16.msra.mxu0 %v492
  %673 = vmatprep.subr.bf16.mxu0 0
  %674 = vmatpush1.bf16.msra.mxu0 %v493
  %675 = vmatprep.subr.bf16.mxu0 0
  %676 = vmatpush1.bf16.msra.mxu0 %v494
  %677 = vmatprep.subr.bf16.mxu0 0
  %678 = vmatpush1.bf16.msra.mxu0 %v495
  %679 = vmatprep.subr.bf16.mxu0 0
  %680 = vmatpush1.bf16.msra.mxu0 %v496
  %681 = vmatprep.subr.bf16.mxu0 0
  %682 = vmatpush1.bf16.msra.mxu0 %v497
  %683 = vmatprep.subr.bf16.mxu0 0
  %684 = vmatpush1.bf16.msra.mxu0 %v498
  %685 = vmatprep.subr.bf16.mxu0 0
  %686 = vmatpush1.bf16.msra.mxu0 %v499
  %687 = vmatprep.subr.bf16.mxu0 0
  %688 = vmatpush1.bf16.msra.mxu0 %v500
  %689 = vmatprep.subr.bf16.mxu0 0
  %690 = vmatpush1.bf16.msra.mxu0 %v501
  %691 = vmatprep.subr.bf16.mxu0 0
  %692 = vmatpush1.bf16.msra.mxu0 %v502
  %693 = vmatprep.subr.bf16.mxu0 0
  %694 = vmatpush1.bf16.msra.mxu0 %v503
  %695 = vmatprep.subr.bf16.mxu0 0
  %696 = vmatpush1.bf16.msra.mxu0 %v504
  %697 = vmatprep.subr.bf16.mxu0 0
  %698 = vmatpush1.bf16.msra.mxu0 %v505
  %699 = vmatprep.subr.bf16.mxu0 0
  %700 = vmatpush1.bf16.msra.mxu0 %v506
  %701 = vmatprep.mubr.bf16.mxu0 %v192
  %702 = vmatmul.mubr.bf16.gmra.mrb[0].mxu0 %v191
  %v703 = vpop.f32.mrb[0].mxu0
  %v704 = vadd.f32 %v663, %v703
  %v705 = vpop.f32.mrb[0].mxu0
  %v706 = vpop.f32.mrb[0].mxu0
  %v707 = vadd.f32 %v666, %v706
  %v708 = vpop.f32.mrb[0].mxu0
  %709 = vdwg.mxu0
  %710 = vmatprep.subr.bf16.mxu0 0
  %711 = vmatpush1.bf16.msra.mxu0 %v507
  %712 = vmatprep.subr.bf16.mxu0 0
  %713 = vmatpush1.bf16.msra.mxu0 %v508
  %714 = vmatprep.subr.bf16.mxu0 0
  %715 = vmatpush1.bf16.msra.mxu0 %v509
  %716 = vmatprep.subr.bf16.mxu0 0
  %717 = vmatpush1.bf16.msra.mxu0 %v510
  %718 = vmatprep.subr.bf16.mxu0 0
  %719 = vmatpush1.bf16.msra.mxu0 %v511
  %720 = vmatprep.subr.bf16.mxu0 0
  %721 = vmatpush1.bf16.msra.mxu0 %v512
  %722 = vmatprep.subr.bf16.mxu0 0
  %723 = vmatpush1.bf16.msra.mxu0 %v513
  %724 = vmatprep.subr.bf16.mxu0 0
  %725 = vmatpush1.bf16.msra.mxu0 %v514
  %726 = vmatprep.subr.bf16.mxu0 0
  %727 = vmatpush1.bf16.msra.mxu0 %v515
  %728 = vmatprep.subr.bf16.mxu0 0
  %729 = vmatpush1.bf16.msra.mxu0 %v516
  %730 = vmatprep.subr.bf16.mxu0 0
  %731 = vmatpush1.bf16.msra.mxu0 %v517
  %732 = vmatprep.subr.bf16.mxu0 0
  %733 = vmatpush1.bf16.msra.mxu0 %v518
  %734 = vmatprep.subr.bf16.mxu0 0
  %735 = vmatpush1.bf16.msra.mxu0 %v519
  %736 = vmatprep.subr.bf16.mxu0 0
  %737 = vmatpush1.bf16.msra.mxu0 %v520
  %738 = vmatprep.subr.bf16.mxu0 0
  %739 = vmatpush1.bf16.msra.mxu0 %v521
  %740 = vmatprep.subr.bf16.mxu0 0
  %741 = vmatpush1.bf16.msra.mxu0 %v522
  %742 = vmatprep.mubr.bf16.mxu0 %v194
  %743 = vmatmul.mubr.bf16.gmra.mrb[0].mxu0 %v193
  %v744 = vpop.f32.mrb[0].mxu0
  %v745 = vadd.f32 %v704, %v744
  %v746 = vpop.f32.mrb[0].mxu0
  %v747 = vpop.f32.mrb[0].mxu0
  %v748 = vadd.f32 %v707, %v747
  %v749 = vpop.f32.mrb[0].mxu0
  %750 = vdwg.mxu0
  %v751 = vmax.f32 %v745, 0.0
  %v752 = vmax.f32 %v748, 0.0
  %v753 = vld [vmem:[%s3] sm:$0xff]
  %v754 = vld [vmem:[%s3 + $0x8] sm:$0xff]
  %v755 = vld [vmem:[%s3 + $0x10] sm:$0xff]
  %v756 = vld [vmem:[%s3 + $0x18] sm:$0xff]
  %v757 = vld [vmem:[%s3 + $0x20] sm:$0xff]
  %v758 = vld [vmem:[%s3 + $0x28] sm:$0xff]
  %v759 = vld [vmem:[%s3 + $0x30] sm:$0xff]
  %v760 = vld [vmem:[%s3 + $0x38] sm:$0xff]
  %v761 = vld [vmem:[%s3 + $0x40] sm:$0xff]
  %v762 = vld [vmem:[%s3 + $0x48] sm:$0xff]
  %v763 = vld [vmem:[%s3 + $0x50] sm:$0xff]
  %v764 = vld [vmem:[%s3 + $0x58] sm:$0xff]
  %v765 = vld [vmem:[%s3 + $0x60] sm:$0xff]
  %v766 = vld [vmem:[%s3 + $0x68] sm:$0xff]
  %v767 = vld [vmem:[%s3 + $0x70] sm:$0xff]
  %v768 = vld [vmem:[%s3 + $0x78] sm:$0xff]
  %vm769 = vcmask 130048
  %v771 = vsel %vm769, %v753, 0
  %v774 = vsel %vm769, %v754, 0
  %v777 = vsel %vm769, %v755, 0
  %v780 = vsel %vm769, %v756, 0
  %v783 = vsel %vm769, %v757, 0
  %v786 = vsel %vm769, %v758, 0
  %v789 = vsel %vm769, %v759, 0
  %v792 = vsel %vm769, %v760, 0
  %v795 = vsel %vm769, %v761, 0
  %v798 = vsel %vm769, %v762, 0
  %v801 = vsel %vm769, %v763, 0
  %v804 = vsel %vm769, %v764, 0
  %v807 = vsel %vm769, %v765, 0
  %v810 = vsel %vm769, %v766, 0
  %v813 = vsel %vm769, %v767, 0
  %v816 = vsel %vm769, %v768, 0
  %818 = vmatprep.subr.mxu0 0.0
  %819 = vmatpush1.msra.mxu0 %v751
  %820 = vmatprep.subr.mxu0 0.0
  %821 = vmatpush1.msra.mxu0 %v752
  %822 = vmatprep.subr.mxu0 0.0
  %823 = vmatpush1.msra.mxu0 0.0
  %824 = vmatprep.subr.mxu0 0.0
  %825 = vmatpush1.msra.mxu0 0.0
  %826 = vmatprep.subr.mxu0 0.0
  %827 = vmatpush1.msra.mxu0 0.0
  %828 = vmatprep.subr.mxu0 0.0
  %829 = vmatpush1.msra.mxu0 0.0
  %830 = vmatprep.subr.mxu0 0.0
  %831 = vmatpush1.msra.mxu0 0.0
  %832 = vmatprep.subr.mxu0 0.0
  %833 = vmatpush1.msra.mxu0 0.0
  %834 = vmatprep.subr.mxu0 0.0
  %835 = vmatpush1.msra.mxu0 0.0
  %836 = vmatprep.subr.mxu0 0.0
  %837 = vmatpush1.msra.mxu0 0.0
  %838 = vmatprep.subr.mxu0 0.0
  %839 = vmatpush1.msra.mxu0 0.0
  %840 = vmatprep.subr.mxu0 0.0
  %841 = vmatpush1.msra.mxu0 0.0
  %842 = vmatprep.subr.mxu0 0.0
  %843 = vmatpush1.msra.mxu0 0.0
  %844 = vmatprep.subr.mxu0 0.0
  %845 = vmatpush1.msra.mxu0 0.0
  %846 = vmatprep.subr.mxu0 0.0
  %847 = vmatpush1.msra.mxu0 0.0
  %848 = vmatprep.subr.mxu0 0.0
  %849 = vmatpush1.msra.mxu0 0.0
  %850 = vmatprep.subr.mxu0 0.0
  %851 = vmatpush1.msra.mxu0 0.0
  %852 = vmatprep.subr.mxu0 0.0
  %853 = vmatpush1.msra.mxu0 0.0
  %854 = vmatprep.subr.mxu0 0.0
  %855 = vmatpush1.msra.mxu0 0.0
  %856 = vmatprep.subr.mxu0 0.0
  %857 = vmatpush1.msra.mxu0 0.0
  %858 = vmatprep.subr.mxu0 0.0
  %859 = vmatpush1.msra.mxu0 0.0
  %860 = vmatprep.subr.mxu0 0.0
  %861 = vmatpush1.msra.mxu0 0.0
  %862 = vmatprep.subr.mxu0 0.0
  %863 = vmatpush1.msra.mxu0 0.0
  %864 = vmatprep.subr.mxu0 0.0
  %865 = vmatpush1.msra.mxu0 0.0
  %866 = vmatprep.subr.mxu0 0.0
  %867 = vmatpush1.msra.mxu0 0.0
  %868 = vmatprep.subr.mxu0 0.0
  %869 = vmatpush1.msra.mxu0 0.0
  %870 = vmatprep.subr.mxu0 0.0
  %871 = vmatpush1.msra.mxu0 0.0
  %872 = vmatprep.subr.mxu0 0.0
  %873 = vmatpush1.msra.mxu0 0.0
  %874 = vmatprep.subr.mxu0 0.0
  %875 = vmatpush1.msra.mxu0 0.0
  %876 = vmatprep.subr.mxu0 0.0
  %877 = vmatpush1.msra.mxu0 0.0
  %878 = vmatprep.subr.mxu0 0.0
  %879 = vmatpush1.msra.mxu0 0.0
  %880 = vmatprep.subr.mxu0 0.0
  %881 = vmatpush1.msra.mxu0 0.0
  %882 = vmatprep.mubr.f32.mxu0 0.0
  %883 = vmatmul.mubr.f32.gmra.mrb[0].mxu0 %v771
  %v884 = vpop.f32.mrb[0].mxu0
  %v885 = vadd.f32 0.0, %v884
  %v886 = vpop.f32.mrb[0].mxu0
  %887 = vmatprep.mubr.f32.mxu0 0.0
  %888 = vmatmul.mubr.f32.gmra.mrb[0].mxu0 %v774
  %v889 = vpop.f32.mrb[0].mxu0
  %v890 = vadd.f32 0.0, %v889
  %v891 = vpop.f32.mrb[0].mxu0
  %892 = vmatprep.mubr.f32.mxu0 0.0
  %893 = vmatmul.mubr.f32.gmra.mrb[0].mxu0 %v777
  %v894 = vpop.f32.mrb[0].mxu0
  %v895 = vadd.f32 0.0, %v894
  %v896 = vpop.f32.mrb[0].mxu0
  %897 = vmatprep.mubr.f32.mxu0 0.0
  %898 = vmatmul.mubr.f32.gmra.mrb[0].mxu0 %v780
  %v899 = vpop.f32.mrb[0].mxu0
  %v900 = vadd.f32 0.0, %v899
  %v901 = vpop.f32.mrb[0].mxu0
  %902 = vmatprep.mubr.f32.mxu0 0.0
  %903 = vmatmul.mubr.f32.gmra.mrb[0].mxu0 %v783
  %v904 = vpop.f32.mrb[0].mxu0
  %v905 = vadd.f32 0.0, %v904
  %v906 = vpop.f32.mrb[0].mxu0
  %907 = vmatprep.mubr.f32.mxu0 0.0
  %908 = vmatmul.mubr.f32.gmra.mrb[0].mxu0 %v786
  %v909 = vpop.f32.mrb[0].mxu0
  %v910 = vadd.f32 0.0, %v909
  %v911 = vpop.f32.mrb[0].mxu0
  %912 = vmatprep.mubr.f32.mxu0 0.0
  %913 = vmatmul.mubr.f32.gmra.mrb[0].mxu0 %v789
  %v914 = vpop.f32.mrb[0].mxu0
  %v915 = vadd.f32 0.0, %v914
  %v916 = vpop.f32.mrb[0].mxu0
  %917 = vmatprep.mubr.f32.mxu0 0.0
  %918 = vmatmul.mubr.f32.gmra.mrb[0].mxu0 %v792
  %v919 = vpop.f32.mrb[0].mxu0
  %v920 = vadd.f32 0.0, %v919
  %v921 = vpop.f32.mrb[0].mxu0
  %922 = vmatprep.mubr.f32.mxu0 0.0
  %923 = vmatmul.mubr.f32.gmra.mrb[0].mxu0 %v795
  %v924 = vpop.f32.mrb[0].mxu0
  %v925 = vadd.f32 0.0, %v924
  %v926 = vpop.f32.mrb[0].mxu0
  %927 = vmatprep.mubr.f32.mxu0 0.0
  %928 = vmatmul.mubr.f32.gmra.mrb[0].mxu0 %v798
  %v929 = vpop.f32.mrb[0].mxu0
  %v930 = vadd.f32 0.0, %v929
  %v931 = vpop.f32.mrb[0].mxu0
  %932 = vmatprep.mubr.f32.mxu0 0.0
  %933 = vmatmul.mubr.f32.gmra.mrb[0].mxu0 %v801
  %v934 = vpop.f32.mrb[0].mxu0
  %v935 = vadd.f32 0.0, %v934
  %v936 = vpop.f32.mrb[0].mxu0
  %937 = vmatprep.mubr.f32.mxu0 0.0
  %938 = vmatmul.mubr.f32.gmra.mrb[0].mxu0 %v804
  %v939 = vpop.f32.mrb[0].mxu0
  %v940 = vadd.f32 0.0, %v939
  %v941 = vpop.f32.mrb[0].mxu0
  %942 = vmatprep.mubr.f32.mxu0 0.0
  %943 = vmatmul.mubr.f32.gmra.mrb[0].mxu0 %v807
  %v944 = vpop.f32.mrb[0].mxu0
  %v945 = vadd.f32 0.0, %v944
  %v946 = vpop.f32.mrb[0].mxu0
  %947 = vmatprep.mubr.f32.mxu0 0.0
  %948 = vmatmul.mubr.f32.gmra.mrb[0].mxu0 %v810
  %v949 = vpop.f32.mrb[0].mxu0
  %v950 = vadd.f32 0.0, %v949
  %v951 = vpop.f32.mrb[0].mxu0
  %952 = vmatprep.mubr.f32.mxu0 0.0
  %953 = vmatmul.mubr.f32.gmra.mrb[0].mxu0 %v813
  %v954 = vpop.f32.mrb[0].mxu0
  %v955 = vadd.f32 0.0, %v954
  %v956 = vpop.f32.mrb[0].mxu0
  %957 = vmatprep.mubr.f32.mxu0 0.0
  %958 = vmatmul.mubr.f32.gmra.mrb[0].mxu0 %v816
  %v959 = vpop.f32.mrb[0].mxu0
  %v960 = vadd.f32 0.0, %v959
  %v961 = vpop.f32.mrb[0].mxu0
  %962 = vdwg.mxu0
  %963 = vxpose.xlu0.b32.start [1/16] %v885, 128
  %964 = vxpose.xlu0.b32.cont [2/16] %v890, 128
  %965 = vxpose.xlu0.b32.cont [3/16] %v895, 128
  %966 = vxpose.xlu0.b32.cont [4/16] %v900, 128
  %967 = vxpose.xlu0.b32.cont [5/16] %v905, 128
  %968 = vxpose.xlu0.b32.cont [6/16] %v910, 128
  %969 = vxpose.xlu0.b32.cont [7/16] %v915, 128
  %970 = vxpose.xlu0.b32.cont [8/16] %v920, 128
  %971 = vxpose.xlu0.b32.cont [9/16] %v925, 128
  %972 = vxpose.xlu0.b32.cont [10/16] %v930, 128
  %973 = vxpose.xlu0.b32.cont [11/16] %v935, 128
  %974 = vxpose.xlu0.b32.cont [12/16] %v940, 128
  %975 = vxpose.xlu0.b32.cont [13/16] %v945, 128
  %976 = vxpose.xlu0.b32.cont [14/16] %v950, 128
  %977 = vxpose.xlu0.b32.cont [15/16] %v955, 128
  %978 = vxpose.xlu0.b32.end [16/16] %v960, 128
  %v979 = vpop.trf.xlu0
  %v980 = vpop.trf.xlu0
  %v981 = vpop.trf.xlu0
  %v982 = vpop.trf.xlu0
  %v983 = vpop.trf.xlu0
  %v984 = vpop.trf.xlu0
  %v985 = vpop.trf.xlu0
  %v986 = vpop.trf.xlu0
  %v987 = vpop.trf.xlu0
  %v988 = vpop.trf.xlu0
  %v989 = vpop.trf.xlu0
  %v990 = vpop.trf.xlu0
  %v991 = vpop.trf.xlu0
  %v992 = vpop.trf.xlu0
  %v993 = vpop.trf.xlu0
  %v994 = vpop.trf.xlu0
  %995 = vst [vmem:[%s4] sm:$0xff] %v979
  %996 = vst [vmem:[%s4 + $0x8] sm:$0xff] %v980
  %997 = vst [vmem:[%s4 + $0x10] sm:$0xff] %v981
  %998 = vst [vmem:[%s4 + $0x18] sm:$0xff] %v982
  %999 = vst [vmem:[%s4 + $0x20] sm:$0xff] %v983
  %1000 = vst [vmem:[%s4 + $0x28] sm:$0xff] %v984
  %1001 = vst [vmem:[%s4 + $0x30] sm:$0xff] %v985
  %1002 = vst [vmem:[%s4 + $0x38] sm:$0xff] %v986
  %1003 = vst [vmem:[%s4 + $0x40] sm:$0xff] %v987
  %1004 = vst [vmem:[%s4 + $0x48] sm:$0xff] %v988
  %1005 = vst [vmem:[%s4 + $0x50] sm:$0xff] %v989
  %1006 = vst [vmem:[%s4 + $0x58] sm:$0xff] %v990
  %1007 = vst [vmem:[%s4 + $0x60] sm:$0xff] %v991
  %1008 = vst [vmem:[%s4 + $0x68] sm:$0xff] %v992
  %1009 = vst [vmem:[%s4 + $0x70] sm:$0xff] %v993
  %1010 = vst [vmem:[%s4 + $0x78] sm:$0xff] %v994
  %v1011 = vmul.f32 %v979, %v979
  %v1012 = vmul.f32 %v980, %v980
  %v1013 = vmul.f32 %v981, %v981
  %v1014 = vmul.f32 %v982, %v982
  %v1015 = vmul.f32 %v983, %v983
  %v1016 = vmul.f32 %v984, %v984
  %v1017 = vmul.f32 %v985, %v985
  %v1018 = vmul.f32 %v986, %v986
  %v1019 = vmul.f32 %v987, %v987
  %v1020 = vmul.f32 %v988, %v988
  %v1021 = vmul.f32 %v989, %v989
  %v1022 = vmul.f32 %v990, %v990
  %v1023 = vmul.f32 %v991, %v991
  %v1024 = vmul.f32 %v992, %v992
  %v1025 = vmul.f32 %v993, %v993
  %v1026 = vmul.f32 %v994, %v994
  %v1027 = vadd.f32 %v1011, %v1012
  %v1028 = vadd.f32 %v1027, %v1013
  %v1029 = vadd.f32 %v1028, %v1014
  %v1030 = vadd.f32 %v1029, %v1015
  %v1031 = vadd.f32 %v1030, %v1016
  %v1032 = vadd.f32 %v1031, %v1017
  %v1033 = vadd.f32 %v1032, %v1018
  %v1034 = vadd.f32 %v1033, %v1019
  %v1035 = vadd.f32 %v1034, %v1020
  %v1036 = vadd.f32 %v1035, %v1021
  %v1037 = vadd.f32 %v1036, %v1022
  %v1038 = vadd.f32 %v1037, %v1023
  %v1039 = vadd.f32 %v1038, %v1024
  %v1040 = vadd.f32 %v1039, %v1025
  %v1041 = vadd.f32 %v1040, %v1026
  %v1042 = vrot.slane %v1041, 4
  %v1043 = vadd.f32 %v1041, %v1042
  %v1044 = vrot.slane %v1043, 2
  %v1045 = vadd.f32 %v1043, %v1044
  %v1046 = vrot.slane %v1045, 1
  %v1047 = vadd.f32 %v1045, %v1046
  %1048 = vst [vmem:[%s5] sm:$0x1] %v1047
  // Predicated region
  $region18: #{_forward_impl.2} parent=0 // pred_check
    _
  $region19: #{_forward_impl.2} parent=0 // pred_check_branch
    %1050 = sbr.rel (0) target = $region21
  $region20: #{_forward_impl.2} parent=0 // pred_region
    _
  $region21: #{_forward_impl.2} parent=0 // pred_fallthru
    _
  // Predicated region
  $region22: #{_forward_impl.2} parent=0 // pred_check
    _
  $region23: #{_forward_impl.2} parent=0 // pred_check_branch
    %1052 = sbr.rel (0) target = $region25
  $region24: #{_forward_impl.2} parent=0 // pred_region
    _
  $region25: #{_forward_impl.2} parent=0 // pred_fallthru
    _
  // Predicated region
  $region26: #{_forward_impl.2} parent=0 // pred_check
    _
  $region27: #{_forward_impl.2} parent=0 // pred_check_branch
    %1054 = sbr.rel (0) target = $region29
  $region28: #{_forward_impl.2} parent=0 // pred_region
    _
  $region29: #{_forward_impl.2} parent=0 // pred_fallthru
    _
  // Predicated region
  $region30: #{_forward_impl.2} parent=0 // pred_check
    _
  $region31: #{_forward_impl.2} parent=0 // pred_check_branch
    %1056 = sbr.rel (0) target = $region33
  $region32: #{_forward_impl.2} parent=0 // pred_region
    _
  $region33: #{_forward_impl.2} parent=0 // pred_fallthru
    _

</llo_original>
